<compile_context>
chip_gen: v6e
topology: v6e:2x2x1
jax: 0.10.0
libtpu: 0.0.40
codegen_flags: <defaults>
</compile_context>

<pallas_src>
import functools

import jax
import jax.numpy as jnp
import numpy as np
from jax.experimental import pallas as pl
from jax.experimental.pallas import tpu as pltpu


def _round_up(x, m):
    return ((x + m - 1) // m) * m


# ----------------------------- Pallas kernel -------------------------------

def _make_conv_kernel(pool):
    """Fused [optional 2x2 maxpool] -> pad(1) -> Conv3x3 -> +bias -> ReLU.

    Refs:
      x_ref   : pool=True : (1, 2*Hp, Wp, 2*Cin)  (W packed as (W/2, 2*C))
                pool=False: (1, Hp, Wp, Cin)
      w_ref   : (9*Cin, Cp)   BN-scale-folded, channel-padded weights
      b_ref   : (1, Cp)       folded BN bias (f32)
      o_ref   : (1, th, Wp, Cp)
      xpad_ref: (Hp+2, Wp+2, Cin) VMEM scratch (zero-padded activation)
    """

    def kernel(x_ref, w_ref, b_ref, o_ref, xpad_ref):
        t = pl.program_id(1)
        _, th, wp, cp = o_ref.shape
        cin = xpad_ref.shape[-1]

        # Fill the zero-padded (and, for conv1, max-pooled) activation scratch
        # once per image; row tiles with t > 0 reuse it (t axis is "arbitrary").
        @pl.when(t == 0)
        def _():
            x = x_ref[0]
            if pool:
                # Lane-packed (Wp, 2*Cin): even / odd W columns are the two
                # contiguous Cin-halves of the lane dim -> W-pool is a lane
                # slice max; H-pool is a major-dim pair max.
                x = jnp.maximum(x[:, :, :cin], x[:, :, cin:])    # (2Hp, Wp, Cin)
                x = x.reshape(x.shape[0] // 2, 2, wp, cin)
                x = jnp.maximum(x[:, 0], x[:, 1])                # (Hp, Wp, Cin)
            xpad_ref[...] = jnp.zeros_like(xpad_ref)
            xpad_ref[pl.ds(1, x.shape[0]), pl.ds(1, x.shape[1]), :] = x

        # im2col in VMEM: (th*Wp, 9*Cin) patch slab for this row tile.
        row0 = t * th
        taps = [xpad_ref[pl.ds(row0 + dy, th), pl.ds(dx, wp), :]
                for dy in range(3) for dx in range(3)]
        patches = jnp.concatenate(taps, axis=-1).reshape(th * wp, 9 * cin)

        acc = jnp.dot(patches, w_ref[...], preferred_element_type=jnp.float32)
        y = jnp.maximum(acc + b_ref[...], 0.0)
        o_ref[0] = y.reshape(th, wp, cp).astype(o_ref.dtype)

    return kernel


# ------------------------------ JAX wrappers -------------------------------

def _conv_bn_relu(x, w2d, bias, *, pool, block_rows=None):
    """x: (N, Hin, Win, Cin) NHWC -> (N, Hout, Wout, Cp), Cp = w2d.shape[-1]
    (padded output channels are exactly zero)."""
    n, hin, win, cin = x.shape
    hp, wp = (hin // 2, win // 2) if pool else (hin, win)
    k, cp = w2d.shape
    assert k == 9 * cin and cp % 128 == 0

    if block_rows is None:
        # ~512 output pixels per tile amortizes per-step overhead while the
        # double-buffered output tile + patch slab stay far below 64 MiB VMEM.
        block_rows = max(1, 512 // max(wp, 1))
    th = max(1, min(block_rows, hp))
    while hp % th:          # row tile must divide Hp
        th -= 1

    if pool:
        # Free (bitcast) repack: (N, 2Hp, 2Wp, C) -> (N, 2Hp, Wp, 2C) so the
        # W-direction pool is a contiguous lane-slice max inside the kernel.
        x_call = x.reshape(n, hin, wp, 2 * cin)
        x_block = (1, hin, wp, 2 * cin)
    else:
        x_call = x
        x_block = (1, hp, wp, cin)

    return pl.pallas_call(
        _make_conv_kernel(pool),
        out_shape=jax.ShapeDtypeStruct((n, hp, wp, cp), x.dtype),
        grid=(n, hp // th),
        in_specs=[
            pl.BlockSpec(x_block, lambda i, t: (i, 0, 0, 0)),   # image-resident
            pl.BlockSpec((k, cp), lambda i, t: (0, 0)),
            pl.BlockSpec((1, cp), lambda i, t: (0, 0)),
        ],
        out_specs=pl.BlockSpec((1, th, wp, cp), lambda i, t: (i, t, 0, 0)),
        scratch_shapes=[pltpu.VMEM((hp + 2, wp + 2, cin), x.dtype)],
        compiler_params=pltpu.CompilerParams(
            dimension_semantics=("parallel", "arbitrary")),
    )(x_call, w2d, bias)


def _fold_bn(gamma, beta, mean, var, eps=1e-5):
    scale = gamma / jnp.sqrt(var + eps)
    return scale, beta - mean * scale


def _prep_conv(w_hwio, gamma, beta, mean, var, *, cin_pad, cout_pad, dtype):
    """Fold BN scale into HWIO conv weights and zero-pad channels.
    Returns ((9*cin_pad, cout_pad) weights, (1, cout_pad) f32 bias)."""
    scale, bias = _fold_bn(gamma, beta, mean, var)
    w = w_hwio * scale[None, None, None, :]
    kh, kw, cin, cout = w.shape
    w = jnp.pad(w, ((0, 0), (0, 0), (0, cin_pad - cin), (0, cout_pad - cout)))
    b = jnp.pad(bias, (0, cout_pad - cout))
    return (w.reshape(kh * kw * cin_pad, cout_pad).astype(dtype),
            b.reshape(1, cout_pad).astype(jnp.float32))


def down_forward(x_nchw, params, *, compute_dtype=jnp.float32, block_rows=None):
    """Down.forward: MaxPool2d(2) then DoubleConv. NCHW in / NCHW out."""
    n, cin, h, w = x_nchw.shape
    if h % 2 or w % 2:                         # MaxPool2d(2) floor semantics
        x_nchw = x_nchw[:, :, : (h // 2) * 2, : (w // 2) * 2]
    mid = params["w1"].shape[-1]
    out = params["w2"].shape[-1]
    cp1 = _round_up(mid, 128)                  # lane-dense output channels
    cp2 = _round_up(out, 128)

    x = jnp.transpose(x_nchw, (0, 2, 3, 1)).astype(compute_dtype)   # NHWC
    w1, b1 = _prep_conv(params["w1"], params["bn1_gamma"], params["bn1_beta"],
                        params["bn1_mean"], params["bn1_var"],
                        cin_pad=cin, cout_pad=cp1, dtype=compute_dtype)
    w2, b2 = _prep_conv(params["w2"], params["bn2_gamma"], params["bn2_beta"],
                        params["bn2_mean"], params["bn2_var"],
                        cin_pad=cp1, cout_pad=cp2, dtype=compute_dtype)

    y = _conv_bn_relu(x, w1, b1, pool=True, block_rows=block_rows)   # pool+conv1
    y = _conv_bn_relu(y, w2, b2, pool=False, block_rows=block_rows)  # conv2
    y = y[..., :out].astype(jnp.float32)
    return jnp.transpose(y, (0, 3, 1, 2))


# ------------------------------ Reference ----------------------------------

def down_forward_ref(x_nchw, params):
    x = jnp.transpose(x_nchw, (0, 2, 3, 1))
    x = jax.lax.reduce_window(x, -jnp.inf, jax.lax.max,
                              (1, 2, 2, 1), (1, 2, 2, 1), "VALID")
    dn = ("NHWC", "HWIO", "NHWC")
    for wk, gk, bk, mk, vk in (("w1", "bn1_gamma", "bn1_beta", "bn1_mean", "bn1_var"),
                               ("w2", "bn2_gamma", "bn2_beta", "bn2_mean", "bn2_var")):
        x = jax.lax.conv_general_dilated(x, params[wk], (1, 1), "SAME",
                                         dimension_numbers=dn)
        s, b = _fold_bn(params[gk], params[bk], params[mk], params[vk])
        x = jnp.maximum(x * s + b, 0.0)
    return jnp.transpose(x, (0, 3, 1, 2))


# --------------------------------- Main -------------------------------------

def make_params(key, in_ch, out_ch):
    mid_ch = out_ch
    ks = jax.random.split(key, 10)

    def conv_w(k, cin, cout):
        fan_in = cin * 9
        return (jax.random.normal(k, (3, 3, cin, cout), jnp.float32)
                / np.sqrt(fan_in))

    return {
        "w1": conv_w(ks[0], in_ch, mid_ch),
        "bn1_gamma": jax.random.uniform(ks[1], (mid_ch,), jnp.float32, 0.5, 1.5),
        "bn1_beta": 0.1 * jax.random.normal(ks[2], (mid_ch,), jnp.float32),
        "bn1_mean": 0.1 * jax.random.normal(ks[3], (mid_ch,), jnp.float32),
        "bn1_var": jax.random.uniform(ks[4], (mid_ch,), jnp.float32, 0.5, 1.5),
        "w2": conv_w(ks[5], mid_ch, out_ch),
        "bn2_gamma": jax.random.uniform(ks[6], (out_ch,), jnp.float32, 0.5, 1.5),
        "bn2_beta": 0.1 * jax.random.normal(ks[7], (out_ch,), jnp.float32),
        "bn2_mean": 0.1 * jax.random.normal(ks[8], (out_ch,), jnp.float32),
        "bn2_var": jax.random.uniform(ks[9], (out_ch,), jnp.float32, 0.5, 1.5),
    }


if __name__ == "__main__":
    key = jax.random.PRNGKey(0)
    k_x, k_p = jax.random.split(key)

    N, Cin, H, W = 2, 4, 16, 16
    Cout = 8
    x = jax.random.normal(k_x, (N, Cin, H, W), jnp.float32)   # NCHW
    params = make_params(k_p, Cin, Cout)

    ref = jax.block_until_ready(down_forward_ref(x, params))

    # f32 path (default row-tile size).
    fwd = jax.jit(functools.partial(down_forward, params=params))
    out = jax.block_until_ready(fwd(x))
    assert out.shape == (N, Cout, H // 2, W // 2), out.shape
    np.testing.assert_allclose(np.asarray(out), np.asarray(ref),
                               rtol=1e-4, atol=1e-4)

    # Multi-row-tile path (exercises scratch reuse at t > 0).
    out_tiled = jax.block_until_ready(
        jax.jit(functools.partial(down_forward, params=params, block_rows=2))(x))
    np.testing.assert_allclose(np.asarray(out_tiled), np.asarray(ref),
                               rtol=1e-4, atol=1e-4)

    # bf16 storage / MXU path (v6e / v7x); f32 accumulation, looser tolerance.
    out_bf16 = jax.block_until_ready(
        jax.jit(functools.partial(down_forward, params=params,
                                  compute_dtype=jnp.bfloat16))(x))
    np.testing.assert_allclose(np.asarray(out_bf16), np.asarray(ref),
                               rtol=5e-2, atol=5e-2)

    print("KERNEL_OK")
</pallas_src>

<mosaic_0001>
module attributes {stable_mosaic.version = 11 : i64} {
  func.func @kernel(%arg0: i32, %arg1: i32, %arg2: memref<1x16x8x8xf32, #tpu.memory_space<vmem>>, %arg3: memref<36x128xf32, #tpu.memory_space<vmem>>, %arg4: memref<1x128xf32, #tpu.memory_space<vmem>>, %arg5: memref<1x8x8x128xf32, #tpu.memory_space<vmem>>, %arg6: memref<10x10x4xf32, #tpu.memory_space<vmem>>) attributes {dimension_semantics = [#tpu.dimension_semantics<parallel>, #tpu.dimension_semantics<arbitrary>], iteration_bounds = array<i64: 2, 1>, scalar_prefetch = 0 : i64, scratch_operands = 1 : i64, tpu.core_type = #tpu.core_type<tc>, window_params = [{transform_indices = @transform_0, window_bounds = array<i64: 1, 16, 8, 8>}, {pipeline_mode = #tpu.pipeline_mode<synchronous>, transform_indices = @transform_1, window_bounds = array<i64: 36, 128>}, {pipeline_mode = #tpu.pipeline_mode<synchronous>, transform_indices = @transform_2, window_bounds = array<i64: 1, 128>}, {transform_indices = @transform_3, window_bounds = array<i64: 1, 8, 8, 128>}]} {
    %c0_i32 = arith.constant 0 : i32
    %0 = arith.cmpi eq, %arg1, %c0_i32 : i32
    %1 = arith.extui %0 : i1 to i32
    %c0_i32_0 = arith.constant 0 : i32
    %2 = arith.cmpi ne, %1, %c0_i32_0 : i32
    scf.if %2 {
      %c0_32 = arith.constant 0 : index
      %c0_33 = arith.constant 0 : index
      %c0_34 = arith.constant 0 : index
      %c0_35 = arith.constant 0 : index
      %44 = vector.load %arg2[%c0_32, %c0_33, %c0_34, %c0_35] : memref<1x16x8x8xf32, #tpu.memory_space<vmem>>, vector<1x16x8x8xf32>
      %45 = vector.shape_cast %44 : vector<1x16x8x8xf32> to vector<16x8x8xf32>
      %46 = vector.extract_strided_slice %45 {offsets = [0, 0, 0], sizes = [16, 8, 4], strides = [1, 1, 1]} : vector<16x8x8xf32> to vector<16x8x4xf32>
      %47 = vector.extract_strided_slice %45 {offsets = [0, 0, 4], sizes = [16, 8, 4], strides = [1, 1, 1]} : vector<16x8x8xf32> to vector<16x8x4xf32>
      %48 = arith.maximumf %46, %47 : vector<16x8x4xf32>
      %49 = vector.shape_cast %48 : vector<16x8x4xf32> to vector<8x2x8x4xf32>
      %50 = vector.extract_strided_slice %49 {offsets = [0, 0, 0, 0], sizes = [8, 1, 8, 4], strides = [1, 1, 1, 1]} : vector<8x2x8x4xf32> to vector<8x1x8x4xf32>
      %51 = vector.shape_cast %50 : vector<8x1x8x4xf32> to vector<8x8x4xf32>
      %52 = vector.extract_strided_slice %49 {offsets = [0, 1, 0, 0], sizes = [8, 1, 8, 4], strides = [1, 1, 1, 1]} : vector<8x2x8x4xf32> to vector<8x1x8x4xf32>
      %53 = vector.shape_cast %52 : vector<8x1x8x4xf32> to vector<8x8x4xf32>
      %54 = arith.maximumf %51, %53 : vector<8x8x4xf32>
      %cst_36 = arith.constant 0.000000e+00 : f32
      %55 = vector.broadcast %cst_36 : f32 to vector<10x10x4xf32>
      %c0_37 = arith.constant 0 : index
      %c0_38 = arith.constant 0 : index
      %c0_39 = arith.constant 0 : index
      %56 = vector.load %arg6[%c0_37, %c0_38, %c0_39] : memref<10x10x4xf32, #tpu.memory_space<vmem>>, vector<10x10x4xf32>
      tpu.vector_store %arg6[%c0_37, %c0_38, %c0_39], %55 {strides = array<i32>} : memref<10x10x4xf32, #tpu.memory_space<vmem>>, vector<10x10x4xf32>,
      %c1_40 = arith.constant 1 : index
      %c1_41 = arith.constant 1 : index
      %c0_42 = arith.constant 0 : index
      %57 = vector.load %arg6[%c1_40, %c1_41, %c0_42] : memref<10x10x4xf32, #tpu.memory_space<vmem>>, vector<8x8x4xf32>
      tpu.vector_store %arg6[%c1_40, %c1_41, %c0_42], %54 {strides = array<i32>} : memref<10x10x4xf32, #tpu.memory_space<vmem>>, vector<8x8x4xf32>,
    } else {
    }
    %c8_i32 = arith.constant 8 : i32
    %3 = arith.muli %arg1, %c8_i32 : i32
    %c0_i32_1 = arith.constant 0 : i32
    %4 = arith.addi %3, %c0_i32_1 : i32
    %5 = arith.index_cast %4 : i32 to index
    %c0 = arith.constant 0 : index
    %c0_2 = arith.constant 0 : index
    %6 = vector.load %arg6[%5, %c0, %c0_2] : memref<10x10x4xf32, #tpu.memory_space<vmem>>, vector<8x8x4xf32>
    %c0_i32_3 = arith.constant 0 : i32
    %7 = arith.addi %3, %c0_i32_3 : i32
    %8 = arith.index_cast %7 : i32 to index
    %c1 = arith.constant 1 : index
    %c0_4 = arith.constant 0 : index
    %9 = vector.load %arg6[%8, %c1, %c0_4] : memref<10x10x4xf32, #tpu.memory_space<vmem>>, vector<8x8x4xf32>
    %c0_i32_5 = arith.constant 0 : i32
    %10 = arith.addi %3, %c0_i32_5 : i32
    %11 = arith.index_cast %10 : i32 to index
    %c2 = arith.constant 2 : index
    %c0_6 = arith.constant 0 : index
    %12 = vector.load %arg6[%11, %c2, %c0_6] : memref<10x10x4xf32, #tpu.memory_space<vmem>>, vector<8x8x4xf32>
    %c1_i32 = arith.constant 1 : i32
    %13 = arith.addi %3, %c1_i32 : i32
    %14 = arith.index_cast %13 : i32 to index
    %c0_7 = arith.constant 0 : index
    %c0_8 = arith.constant 0 : index
    %15 = vector.load %arg6[%14, %c0_7, %c0_8] : memref<10x10x4xf32, #tpu.memory_space<vmem>>, vector<8x8x4xf32>
    %c1_i32_9 = arith.constant 1 : i32
    %16 = arith.addi %3, %c1_i32_9 : i32
    %17 = arith.index_cast %16 : i32 to index
    %c1_10 = arith.constant 1 : index
    %c0_11 = arith.constant 0 : index
    %18 = vector.load %arg6[%17, %c1_10, %c0_11] : memref<10x10x4xf32, #tpu.memory_space<vmem>>, vector<8x8x4xf32>
    %c1_i32_12 = arith.constant 1 : i32
    %19 = arith.addi %3, %c1_i32_12 : i32
    %20 = arith.index_cast %19 : i32 to index
    %c2_13 = arith.constant 2 : index
    %c0_14 = arith.constant 0 : index
    %21 = vector.load %arg6[%20, %c2_13, %c0_14] : memref<10x10x4xf32, #tpu.memory_space<vmem>>, vector<8x8x4xf32>
    %c2_i32 = arith.constant 2 : i32
    %22 = arith.addi %3, %c2_i32 : i32
    %23 = arith.index_cast %22 : i32 to index
    %c0_15 = arith.constant 0 : index
    %c0_16 = arith.constant 0 : index
    %24 = vector.load %arg6[%23, %c0_15, %c0_16] : memref<10x10x4xf32, #tpu.memory_space<vmem>>, vector<8x8x4xf32>
    %c2_i32_17 = arith.constant 2 : i32
    %25 = arith.addi %3, %c2_i32_17 : i32
    %26 = arith.index_cast %25 : i32 to index
    %c1_18 = arith.constant 1 : index
    %c0_19 = arith.constant 0 : index
    %27 = vector.load %arg6[%26, %c1_18, %c0_19] : memref<10x10x4xf32, #tpu.memory_space<vmem>>, vector<8x8x4xf32>
    %c2_i32_20 = arith.constant 2 : i32
    %28 = arith.addi %3, %c2_i32_20 : i32
    %29 = arith.index_cast %28 : i32 to index
    %c2_21 = arith.constant 2 : index
    %c0_22 = arith.constant 0 : index
    %30 = vector.load %arg6[%29, %c2_21, %c0_22] : memref<10x10x4xf32, #tpu.memory_space<vmem>>, vector<8x8x4xf32>
    %31 = tpu.concatenate %6, %9, %12, %15, %18, %21, %24, %27, %30 in 2 : vector<8x8x4xf32>, vector<8x8x4xf32>, vector<8x8x4xf32>, vector<8x8x4xf32>, vector<8x8x4xf32>, vector<8x8x4xf32>, vector<8x8x4xf32>, vector<8x8x4xf32>, vector<8x8x4xf32> -> vector<8x8x36xf32>
    %32 = vector.shape_cast %31 : vector<8x8x36xf32> to vector<64x36xf32>
    %c0_23 = arith.constant 0 : index
    %c0_24 = arith.constant 0 : index
    %33 = vector.load %arg3[%c0_23, %c0_24] : memref<36x128xf32, #tpu.memory_space<vmem>>, vector<36x128xf32>
    %cst = arith.constant dense<0.000000e+00> : vector<64x128xf32>
    %34 = tpu.matmul %32, %33, %cst {dimension_numbers = #tpu.dot_dimension_numbers<[1], [0], [0], [1], [0, 0, 1, 1], [], []>} : vector<64x36xf32>, vector<36x128xf32>, vector<64x128xf32> -> vector<64x128xf32>
    %c0_25 = arith.constant 0 : index
    %c0_26 = arith.constant 0 : index
    %35 = vector.load %arg4[%c0_25, %c0_26] : memref<1x128xf32, #tpu.memory_space<vmem>>, vector<1x128xf32>
    %36 = vector.broadcast %35 : vector<1x128xf32> to vector<64x128xf32>
    %37 = arith.addf %34, %36 : vector<64x128xf32>
    %cst_27 = arith.constant 0.000000e+00 : f32
    %38 = vector.broadcast %cst_27 : f32 to vector<64x128xf32>
    %39 = arith.maximumf %37, %38 : vector<64x128xf32>
    %40 = vector.shape_cast %39 : vector<64x128xf32> to vector<8x8x128xf32>
    %c0_28 = arith.constant 0 : index
    %c0_29 = arith.constant 0 : index
    %c0_30 = arith.constant 0 : index
    %c0_31 = arith.constant 0 : index
    %41 = vector.load %arg5[%c0_28, %c0_29, %c0_30, %c0_31] : memref<1x8x8x128xf32, #tpu.memory_space<vmem>>, vector<1x8x8x128xf32>
    %42 = vector.shape_cast %41 : vector<1x8x8x128xf32> to vector<8x8x128xf32>
    %43 = vector.shape_cast %40 : vector<8x8x128xf32> to vector<1x8x8x128xf32>
    tpu.vector_store %arg5[%c0_28, %c0_29, %c0_30, %c0_31], %43 {strides = array<i32>} : memref<1x8x8x128xf32, #tpu.memory_space<vmem>>, vector<1x8x8x128xf32>,
    return
  }
  func.func @transform_0(%arg0: i32, %arg1: i32) -> (i32, i32, i32, i32) {
    %c0_i32 = arith.constant 0 : i32
    %c0_i32_0 = arith.constant 0 : i32
    %c0_i32_1 = arith.constant 0 : i32
    %c0_i32_2 = arith.constant 0 : i32
    return %arg0, %c0_i32, %c0_i32_0, %c0_i32_1 : i32, i32, i32, i32
  }
  func.func @transform_1(%arg0: i32, %arg1: i32) -> (i32, i32) {
    %c0_i32 = arith.constant 0 : i32
    %c0_i32_0 = arith.constant 0 : i32
    %c0_i32_1 = arith.constant 0 : i32
    return %c0_i32, %c0_i32_0 : i32, i32
  }
  func.func @transform_2(%arg0: i32, %arg1: i32) -> (i32, i32) {
    %c0_i32 = arith.constant 0 : i32
    %c0_i32_0 = arith.constant 0 : i32
    %c0_i32_1 = arith.constant 0 : i32
    return %c0_i32, %c0_i32_0 : i32, i32
  }
  func.func @transform_3(%arg0: i32, %arg1: i32) -> (i32, i32, i32, i32) {
    %c0_i32 = arith.constant 0 : i32
    %c0_i32_0 = arith.constant 0 : i32
    %c0_i32_1 = arith.constant 0 : i32
    return %arg0, %arg1, %c0_i32, %c0_i32_0 : i32, i32, i32, i32
  }
}

module attributes {stable_mosaic.version = 11 : i64} {
  func.func @kernel(%arg0: i32, %arg1: i32, %arg2: memref<1x8x8x128xf32, #tpu.memory_space<vmem>>, %arg3: memref<1152x128xf32, #tpu.memory_space<vmem>>, %arg4: memref<1x128xf32, #tpu.memory_space<vmem>>, %arg5: memref<1x8x8x128xf32, #tpu.memory_space<vmem>>, %arg6: memref<10x10x128xf32, #tpu.memory_space<vmem>>) attributes {dimension_semantics = [#tpu.dimension_semantics<parallel>, #tpu.dimension_semantics<arbitrary>], iteration_bounds = array<i64: 2, 1>, scalar_prefetch = 0 : i64, scratch_operands = 1 : i64, tpu.core_type = #tpu.core_type<tc>, window_params = [{transform_indices = @transform_0, window_bounds = array<i64: 1, 8, 8, 128>}, {pipeline_mode = #tpu.pipeline_mode<synchronous>, transform_indices = @transform_1, window_bounds = array<i64: 1152, 128>}, {pipeline_mode = #tpu.pipeline_mode<synchronous>, transform_indices = @transform_2, window_bounds = array<i64: 1, 128>}, {transform_indices = @transform_3, window_bounds = array<i64: 1, 8, 8, 128>}]} {
    %c0_i32 = arith.constant 0 : i32
    %0 = arith.cmpi eq, %arg1, %c0_i32 : i32
    %1 = arith.extui %0 : i1 to i32
    %c0_i32_0 = arith.constant 0 : i32
    %2 = arith.cmpi ne, %1, %c0_i32_0 : i32
    scf.if %2 {
      %c0_32 = arith.constant 0 : index
      %c0_33 = arith.constant 0 : index
      %c0_34 = arith.constant 0 : index
      %c0_35 = arith.constant 0 : index
      %44 = vector.load %arg2[%c0_32, %c0_33, %c0_34, %c0_35] : memref<1x8x8x128xf32, #tpu.memory_space<vmem>>, vector<1x8x8x128xf32>
      %45 = vector.shape_cast %44 : vector<1x8x8x128xf32> to vector<8x8x128xf32>
      %cst_36 = arith.constant 0.000000e+00 : f32
      %46 = vector.broadcast %cst_36 : f32 to vector<10x10x128xf32>
      %c0_37 = arith.constant 0 : index
      %c0_38 = arith.constant 0 : index
      %c0_39 = arith.constant 0 : index
      %47 = vector.load %arg6[%c0_37, %c0_38, %c0_39] : memref<10x10x128xf32, #tpu.memory_space<vmem>>, vector<10x10x128xf32>
      tpu.vector_store %arg6[%c0_37, %c0_38, %c0_39], %46 {strides = array<i32>} : memref<10x10x128xf32, #tpu.memory_space<vmem>>, vector<10x10x128xf32>,
      %c1_40 = arith.constant 1 : index
      %c1_41 = arith.constant 1 : index
      %c0_42 = arith.constant 0 : index
      %48 = vector.load %arg6[%c1_40, %c1_41, %c0_42] : memref<10x10x128xf32, #tpu.memory_space<vmem>>, vector<8x8x128xf32>
      tpu.vector_store %arg6[%c1_40, %c1_41, %c0_42], %45 {strides = array<i32>} : memref<10x10x128xf32, #tpu.memory_space<vmem>>, vector<8x8x128xf32>,
    } else {
    }
    %c8_i32 = arith.constant 8 : i32
    %3 = arith.muli %arg1, %c8_i32 : i32
    %c0_i32_1 = arith.constant 0 : i32
    %4 = arith.addi %3, %c0_i32_1 : i32
    %5 = arith.index_cast %4 : i32 to index
    %c0 = arith.constant 0 : index
    %c0_2 = arith.constant 0 : index
    %6 = vector.load %arg6[%5, %c0, %c0_2] : memref<10x10x128xf32, #tpu.memory_space<vmem>>, vector<8x8x128xf32>
    %c0_i32_3 = arith.constant 0 : i32
    %7 = arith.addi %3, %c0_i32_3 : i32
    %8 = arith.index_cast %7 : i32 to index
    %c1 = arith.constant 1 : index
    %c0_4 = arith.constant 0 : index
    %9 = vector.load %arg6[%8, %c1, %c0_4] : memref<10x10x128xf32, #tpu.memory_space<vmem>>, vector<8x8x128xf32>
    %c0_i32_5 = arith.constant 0 : i32
    %10 = arith.addi %3, %c0_i32_5 : i32
    %11 = arith.index_cast %10 : i32 to index
    %c2 = arith.constant 2 : index
    %c0_6 = arith.constant 0 : index
    %12 = vector.load %arg6[%11, %c2, %c0_6] : memref<10x10x128xf32, #tpu.memory_space<vmem>>, vector<8x8x128xf32>
    %c1_i32 = arith.constant 1 : i32
    %13 = arith.addi %3, %c1_i32 : i32
    %14 = arith.index_cast %13 : i32 to index
    %c0_7 = arith.constant 0 : index
    %c0_8 = arith.constant 0 : index
    %15 = vector.load %arg6[%14, %c0_7, %c0_8] : memref<10x10x128xf32, #tpu.memory_space<vmem>>, vector<8x8x128xf32>
    %c1_i32_9 = arith.constant 1 : i32
    %16 = arith.addi %3, %c1_i32_9 : i32
    %17 = arith.index_cast %16 : i32 to index
    %c1_10 = arith.constant 1 : index
    %c0_11 = arith.constant 0 : index
    %18 = vector.load %arg6[%17, %c1_10, %c0_11] : memref<10x10x128xf32, #tpu.memory_space<vmem>>, vector<8x8x128xf32>
    %c1_i32_12 = arith.constant 1 : i32
    %19 = arith.addi %3, %c1_i32_12 : i32
    %20 = arith.index_cast %19 : i32 to index
    %c2_13 = arith.constant 2 : index
    %c0_14 = arith.constant 0 : index
    %21 = vector.load %arg6[%20, %c2_13, %c0_14] : memref<10x10x128xf32, #tpu.memory_space<vmem>>, vector<8x8x128xf32>
    %c2_i32 = arith.constant 2 : i32
    %22 = arith.addi %3, %c2_i32 : i32
    %23 = arith.index_cast %22 : i32 to index
    %c0_15 = arith.constant 0 : index
    %c0_16 = arith.constant 0 : index
    %24 = vector.load %arg6[%23, %c0_15, %c0_16] : memref<10x10x128xf32, #tpu.memory_space<vmem>>, vector<8x8x128xf32>
    %c2_i32_17 = arith.constant 2 : i32
    %25 = arith.addi %3, %c2_i32_17 : i32
    %26 = arith.index_cast %25 : i32 to index
    %c1_18 = arith.constant 1 : index
    %c0_19 = arith.constant 0 : index
    %27 = vector.load %arg6[%26, %c1_18, %c0_19] : memref<10x10x128xf32, #tpu.memory_space<vmem>>, vector<8x8x128xf32>
    %c2_i32_20 = arith.constant 2 : i32
    %28 = arith.addi %3, %c2_i32_20 : i32
    %29 = arith.index_cast %28 : i32 to index
    %c2_21 = arith.constant 2 : index
    %c0_22 = arith.constant 0 : index
    %30 = vector.load %arg6[%29, %c2_21, %c0_22] : memref<10x10x128xf32, #tpu.memory_space<vmem>>, vector<8x8x128xf32>
    %31 = tpu.concatenate %6, %9, %12, %15, %18, %21, %24, %27, %30 in 2 : vector<8x8x128xf32>, vector<8x8x128xf32>, vector<8x8x128xf32>, vector<8x8x128xf32>, vector<8x8x128xf32>, vector<8x8x128xf32>, vector<8x8x128xf32>, vector<8x8x128xf32>, vector<8x8x128xf32> -> vector<8x8x1152xf32>
    %32 = vector.shape_cast %31 : vector<8x8x1152xf32> to vector<64x1152xf32>
    %c0_23 = arith.constant 0 : index
    %c0_24 = arith.constant 0 : index
    %33 = vector.load %arg3[%c0_23, %c0_24] : memref<1152x128xf32, #tpu.memory_space<vmem>>, vector<1152x128xf32>
    %cst = arith.constant dense<0.000000e+00> : vector<64x128xf32>
    %34 = tpu.matmul %32, %33, %cst {dimension_numbers = #tpu.dot_dimension_numbers<[1], [0], [0], [1], [0, 0, 1, 1], [], []>} : vector<64x1152xf32>, vector<1152x128xf32>, vector<64x128xf32> -> vector<64x128xf32>
    %c0_25 = arith.constant 0 : index
    %c0_26 = arith.constant 0 : index
    %35 = vector.load %arg4[%c0_25, %c0_26] : memref<1x128xf32, #tpu.memory_space<vmem>>, vector<1x128xf32>
    %36 = vector.broadcast %35 : vector<1x128xf32> to vector<64x128xf32>
    %37 = arith.addf %34, %36 : vector<64x128xf32>
    %cst_27 = arith.constant 0.000000e+00 : f32
    %38 = vector.broadcast %cst_27 : f32 to vector<64x128xf32>
    %39 = arith.maximumf %37, %38 : vector<64x128xf32>
    %40 = vector.shape_cast %39 : vector<64x128xf32> to vector<8x8x128xf32>
    %c0_28 = arith.constant 0 : index
    %c0_29 = arith.constant 0 : index
    %c0_30 = arith.constant 0 : index
    %c0_31 = arith.constant 0 : index
    %41 = vector.load %arg5[%c0_28, %c0_29, %c0_30, %c0_31] : memref<1x8x8x128xf32, #tpu.memory_space<vmem>>, vector<1x8x8x128xf32>
    %42 = vector.shape_cast %41 : vector<1x8x8x128xf32> to vector<8x8x128xf32>
    %43 = vector.shape_cast %40 : vector<8x8x128xf32> to vector<1x8x8x128xf32>
    tpu.vector_store %arg5[%c0_28, %c0_29, %c0_30, %c0_31], %43 {strides = array<i32>} : memref<1x8x8x128xf32, #tpu.memory_space<vmem>>, vector<1x8x8x128xf32>,
    return
  }
  func.func @transform_0(%arg0: i32, %arg1: i32) -> (i32, i32, i32, i32) {
    %c0_i32 = arith.constant 0 : i32
    %c0_i32_0 = arith.constant 0 : i32
    %c0_i32_1 = arith.constant 0 : i32
    %c0_i32_2 = arith.constant 0 : i32
    return %arg0, %c0_i32, %c0_i32_0, %c0_i32_1 : i32, i32, i32, i32
  }
  func.func @transform_1(%arg0: i32, %arg1: i32) -> (i32, i32) {
    %c0_i32 = arith.constant 0 : i32
    %c0_i32_0 = arith.constant 0 : i32
    %c0_i32_1 = arith.constant 0 : i32
    return %c0_i32, %c0_i32_0 : i32, i32
  }
  func.func @transform_2(%arg0: i32, %arg1: i32) -> (i32, i32) {
    %c0_i32 = arith.constant 0 : i32
    %c0_i32_0 = arith.constant 0 : i32
    %c0_i32_1 = arith.constant 0 : i32
    return %c0_i32, %c0_i32_0 : i32, i32
  }
  func.func @transform_3(%arg0: i32, %arg1: i32) -> (i32, i32, i32, i32) {
    %c0_i32 = arith.constant 0 : i32
    %c0_i32_0 = arith.constant 0 : i32
    %c0_i32_1 = arith.constant 0 : i32
    return %arg0, %arg1, %c0_i32, %c0_i32_0 : i32, i32, i32, i32
  }
}

</mosaic_0001>

<llo_original>
// kernel: down_forward.2
$region0: #{down_forward.2}
  #allocation0 [shape = 'u32[]', space=smem, size = 0x4, offset = 0x4, fixed_abs, tag = 'smem constant byte address 0x4 - core index']
  #allocation1 [shape = 'u32[144,128]{1,0:T(1,128)}', space=vmem, size = 0x12000, scoped, tag = 'internal scratch']
  #allocation2 [shape = 'f32[10,10,4]{2,1,0:T(8,128)}', space=vmem, size = 0x14000, scoped, tag = 'scratch operand']
  %s0 = inlined_call_operand.vmem [shape: f32[2,16,8,8], index: 0, kind: input, shape index: {}]
  %s1 = inlined_call_operand.vmem [shape: f32[36,128], index: 1, kind: input, shape index: {}]
  %s2 = inlined_call_operand.vmem [shape: f32[1,128], index: 2, kind: input, shape index: {}]
  %s3 = inlined_call_operand.vmem [shape: f32[2,8,8,128], index: 3, kind: output, shape index: {}]
  %s4 = sld [smem:[#allocation0]]
  $region49: #{down_forward.2} parent=0
    _
  %s6 = ssub.s32 1, %s4
  %s7 = scalar_select 0, %s6, %s4
  loop: start=0, step=1, limit=4
  $region2: #{down_forward.2} parent=0 // loop_pre_header
    _
  $region3: #{down_forward.2} parent=0 // loop_header
    %s9 = sphi 0, %s13
    %p10 = scmp.ge.s32.totalorder %s9, 4
    %s16 = sphi 0, %s28
    %s17 = sphi 0, %s24
    %s18 = sphi 0, %s16
    %s19 = sphi 0, %s17
    %s20 = sphi 0, %s18
    %s21 = sphi 0, %s19
    %s31 = sphi 0, %s33
    %s34 = sphi 0, %s31
    %s35 = sphi 0, %s34
    %s51 = sphi 0, %s35
    %s55 = sphi 0, %s55
    %s57 = sphi 0, %s55
    %s58 = sphi 0, %s57
    %s72 = sphi 0, %s58
    %s76 = sphi 0, %s76
    %s78 = sphi 0, %s76
    %s79 = sphi 0, %s78
    %s93 = sphi 0, %s79
    %s101 = sphi 0, %s103
    %s104 = sphi 0, %s101
    %s105 = sphi 0, %s104
    %s121 = sphi 0, %s105
  $region4: #{down_forward.2} parent=0 // loop_header_branch
    %12 = sbr.rel (%p10) target = $region8
  $region5: #{down_forward.2} parent=0 // loop_body
    %s14 = ssub.s32 %s9, 1
    %s15 = ssub.s32 %s9, 2
    %s22 = sadd.s32 1, %s17
    %p23 = scmp.ge.s32.totalorder %s22, 1
    %s24 = scalar_select %p23, 0, %s22
    %s25 = sadd.s32 1, %s16
    %s26 = scalar_select %p23, %s25, %s16
    %p27 = scmp.ge.s32.totalorder %s26, 2
    %s28 = scalar_select %p27, 0, %s26
    %s29 = ssub.s32 %s16, %s28
    %p30 = scmp.eq.s32.totalorder %s29, 0
    %s32 = sadd.s32 %s31, 1
    %s33 = scalar_select %p30, %s31, %s32
    %p36 = pneg %p30
    %p37 = scmp.eq.s32.totalorder %s9, 1
    %p38 = por %p36, %p37
    %p39 = scmp.ne.s32.totalorder %s31, %s34
    %p40 = scmp.eq.s32.totalorder %s9, 0
    %p41 = por %p39, %p40
    %p42 = scmp.ne.s32.totalorder %s31, %s34
    %p43 = scmp.eq.s32.totalorder %s14, 1
    %p44 = por %p42, %p43
    %p45 = scmp.ne.s32.totalorder %s34, %s35
    %p46 = scmp.eq.s32.totalorder %s14, 0
    %p47 = por %p45, %p46
    %p48 = scmp.ne.s32.totalorder %s34, %s35
    %p49 = scmp.eq.s32.totalorder %s15, 1
    %p50 = por %p48, %p49
    %p52 = scmp.ne.s32.totalorder %s35, %s51
    %p53 = scmp.eq.s32.totalorder %s15, 0
    %p54 = por %p52, %p53
    %s56 = sadd.s32 %s55, 1
    %p59 = scmp.eq.s32.totalorder %s9, 1
    %p60 = scmp.ne.s32.totalorder %s55, %s57
    %p61 = scmp.eq.s32.totalorder %s9, 0
    %p62 = por %p60, %p61
    %p63 = scmp.ne.s32.totalorder %s55, %s57
    %p64 = scmp.eq.s32.totalorder %s14, 1
    %p65 = por %p63, %p64
    %p66 = scmp.ne.s32.totalorder %s57, %s58
    %p67 = scmp.eq.s32.totalorder %s14, 0
    %p68 = por %p66, %p67
    %p69 = scmp.ne.s32.totalorder %s57, %s58
    %p70 = scmp.eq.s32.totalorder %s15, 1
    %p71 = por %p69, %p70
    %p73 = scmp.ne.s32.totalorder %s58, %s72
    %p74 = scmp.eq.s32.totalorder %s15, 0
    %p75 = por %p73, %p74
    %s77 = sadd.s32 %s76, 1
    %p80 = scmp.eq.s32.totalorder %s9, 1
    %p81 = scmp.ne.s32.totalorder %s76, %s78
    %p82 = scmp.eq.s32.totalorder %s9, 0
    %p83 = por %p81, %p82
    %p84 = scmp.ne.s32.totalorder %s76, %s78
    %p85 = scmp.eq.s32.totalorder %s14, 1
    %p86 = por %p84, %p85
    %p87 = scmp.ne.s32.totalorder %s78, %s79
    %p88 = scmp.eq.s32.totalorder %s14, 0
    %p89 = por %p87, %p88
    %p90 = scmp.ne.s32.totalorder %s78, %s79
    %p91 = scmp.eq.s32.totalorder %s15, 1
    %p92 = por %p90, %p91
    %p94 = scmp.ne.s32.totalorder %s79, %s93
    %p95 = scmp.eq.s32.totalorder %s15, 0
    %p96 = por %p94, %p95
    %s97 = ssub.s32 %s16, %s28
    %s98 = ssub.s32 %s17, %s24
    %s99 = sor.u32 %s97, %s98
    %p100 = scmp.eq.s32.totalorder %s99, 0
    %s102 = sadd.s32 %s101, 1
    %s103 = scalar_select %p100, %s101, %s102
    %p106 = pneg %p100
    %p107 = scmp.eq.s32.totalorder %s9, 1
    %p108 = por %p106, %p107
    %p109 = scmp.ne.s32.totalorder %s101, %s104
    %p110 = scmp.eq.s32.totalorder %s9, 0
    %p111 = por %p109, %p110
    %p112 = scmp.ne.s32.totalorder %s101, %s104
    %p113 = scmp.eq.s32.totalorder %s14, 1
    %p114 = por %p112, %p113
    %p115 = scmp.ne.s32.totalorder %s104, %s105
    %p116 = scmp.eq.s32.totalorder %s14, 0
    %p117 = por %p115, %p116
    %p118 = scmp.ne.s32.totalorder %s104, %s105
    %p119 = scmp.eq.s32.totalorder %s15, 1
    %p120 = por %p118, %p119
    %p122 = scmp.ne.s32.totalorder %s105, %s121
    %p123 = scmp.eq.s32.totalorder %s15, 0
    %p124 = por %p122, %p123
    %p125 = scmp.le.s32.totalorder 1, %s9
    %p126 = scmp.lt.s32.totalorder %s9, 3
    %p127 = pnand %p125, %p126
    %p128 = pneg %p127
    // Predicated region
    $region9: #{down_forward.2} parent=5 // pred_check
      _
    $region10: #{down_forward.2} parent=5 // pred_check_branch
      %130 = sbr.rel (%p127) target = $region12
    $region11: #{down_forward.2} parent=5 // pred_region
      %s131 = ssub.s32 %s9, 1
      // Predicated region
      $region13: #{down_forward.2} parent=11 // pred_check
        %p132 = pneg %p68
      $region14: #{down_forward.2} parent=11 // pred_check_branch
        %134 = sbr.rel (%p132) target = $region16
      $region15: #{down_forward.2} parent=11 // pred_region
        _
      $region16: #{down_forward.2} parent=11 // pred_fallthru
        _
      // Predicated region
      $region17: #{down_forward.2} parent=11 // pred_check
        %p135 = pneg %p89
      $region18: #{down_forward.2} parent=11 // pred_check_branch
        %137 = sbr.rel (%p135) target = $region20
      $region19: #{down_forward.2} parent=11 // pred_region
        _
      $region20: #{down_forward.2} parent=11 // pred_fallthru
        _
    $region12: #{down_forward.2} parent=5 // pred_fallthru
      _
    %p138 = scmp.lt.s32.totalorder %s9, 2
    // Predicated region
    $region21: #{down_forward.2} parent=5 // pred_check
      %p139 = pneg %p138
    $region22: #{down_forward.2} parent=5 // pred_check_branch
      %141 = sbr.rel (%p139) target = $region24
    $region23: #{down_forward.2} parent=5 // pred_region
      // Predicated region
      $region25: #{down_forward.2} parent=23 // pred_check
        %p142 = pneg %p41
      $region26: #{down_forward.2} parent=23 // pred_check_branch
        %144 = sbr.rel (%p142) target = $region28
      $region27: #{down_forward.2} parent=23 // pred_region
        %p145 = scmp.lt.s32.totalorder %s16, 1
        %s146 = scalar_select %p145, %s16, 1
        %s147 = smul.addr %s146, 16
        %s148 = smul.addr %s147, 8
        %s149 = scalar_lea.vmem %s0, %s148
      $region28: #{down_forward.2} parent=23 // pred_fallthru
        _
    $region24: #{down_forward.2} parent=5 // pred_fallthru
      _
    %p150 = scmp.le.s32.totalorder 1, %s9
    %p151 = scmp.lt.s32.totalorder %s9, 3
    %p152 = pnand %p150, %p151
    %p153 = pneg %p152
    // Predicated region
    $region29: #{down_forward.2} parent=5 // pred_check
      _
    $region30: #{down_forward.2} parent=5 // pred_check_branch
      %155 = sbr.rel (%p152) target = $region32
    $region31: #{down_forward.2} parent=5 // pred_region
      %s156 = ssub.s32 %s9, 1
      %p157 = scmp.lt.s32.totalorder %s18, 1
      %s158 = scalar_select %p157, %s18, 1
      %s159 = smul.addr %s158, 16
      %s160 = smul.addr %s159, 8
      %s161 = scalar_lea.vmem %s0, %s160
      %p162 = pneg %p47
      %p163 = pneg %p44
      %p164 = pneg %p68
      %p165 = pneg %p65
      %p166 = pneg %p89
      %p167 = pneg %p86
      %p168 = pneg %p117
      %p169 = pneg %p114
      %s170 = smul.u32 8, %s19
      %p171 = scmp.lt.s32.totalorder %s18, 1
      %s172 = scalar_select %p171, %s18, 1
      %p173 = scmp.lt.s32.totalorder %s170, 7
      %s174 = scalar_select %p173, %s170, 7
      %s175 = smul.addr %s172, 8
      %s176 = sadd.s32 %s174, %s175
      %s177 = smul.addr %s176, 8
      %s178 = scalar_lea.vmem %s3, %s177
      %p179 = scmp.lt.s32.totalorder %s18, 1
      %s180 = scalar_select %p179, %s18, 1
      %s181 = smul.addr %s180, 16
      %s182 = smul.addr %s181, 8
      %s183 = scalar_lea.vmem %s0, %s182
      %s184 = smul.u32 8, %s19
      %p185 = scmp.lt.s32.totalorder %s18, 1
      %s186 = scalar_select %p185, %s18, 1
      %p187 = scmp.lt.s32.totalorder %s184, 7
      %s188 = scalar_select %p187, %s184, 7
      %s189 = smul.addr %s186, 8
      %s190 = sadd.s32 %s188, %s189
      %s191 = smul.addr %s190, 8
      %s192 = scalar_lea.vmem %s3, %s191
      %s193 = smul.u32 8, %s19
      %p194 = scmp.eq.s32.totalorder %s19, 0
      // Predicated region
      $region33: #{down_forward.2} parent=31 // pred_check
        %p195 = pneg %p194
      $region34: #{down_forward.2} parent=31 // pred_check_branch
        %197 = sbr.rel (%p195) target = $region36
      $region35: #{down_forward.2} parent=31 // pred_region
        %v198 = vld [vmem:[%s183] sm:$0xff]
        %v199 = vld [vmem:[%s183 + $0x8] sm:$0xff]
        %v200 = vld [vmem:[%s183 + $0x10] sm:$0xff]
        %v201 = vld [vmem:[%s183 + $0x18] sm:$0xff]
        %v202 = vld [vmem:[%s183 + $0x20] sm:$0xff]
        %v203 = vld [vmem:[%s183 + $0x28] sm:$0xff]
        %v204 = vld [vmem:[%s183 + $0x30] sm:$0xff]
        %v205 = vld [vmem:[%s183 + $0x38] sm:$0xff]
        %v206 = vld [vmem:[%s183 + $0x40] sm:$0xff]
        %v207 = vld [vmem:[%s183 + $0x48] sm:$0xff]
        %v208 = vld [vmem:[%s183 + $0x50] sm:$0xff]
        %v209 = vld [vmem:[%s183 + $0x58] sm:$0xff]
        %v210 = vld [vmem:[%s183 + $0x60] sm:$0xff]
        %v211 = vld [vmem:[%s183 + $0x68] sm:$0xff]
        %v212 = vld [vmem:[%s183 + $0x70] sm:$0xff]
        %v213 = vld [vmem:[%s183 + $0x78] sm:$0xff]
        %230 = vrot.lane.b32.xlu0 %v198, 124
        %v231 = vpop.permute.xlu0 %230
        %232 = vrot.lane.b32.xlu0 %v199, 124
        %v233 = vpop.permute.xlu0 %232
        %234 = vrot.lane.b32.xlu0 %v200, 124
        %v235 = vpop.permute.xlu0 %234
        %236 = vrot.lane.b32.xlu0 %v201, 124
        %v237 = vpop.permute.xlu0 %236
        %238 = vrot.lane.b32.xlu0 %v202, 124
        %v239 = vpop.permute.xlu0 %238
        %240 = vrot.lane.b32.xlu0 %v203, 124
        %v241 = vpop.permute.xlu0 %240
        %242 = vrot.lane.b32.xlu0 %v204, 124
        %v243 = vpop.permute.xlu0 %242
        %244 = vrot.lane.b32.xlu0 %v205, 124
        %v245 = vpop.permute.xlu0 %244
        %246 = vrot.lane.b32.xlu0 %v206, 124
        %v247 = vpop.permute.xlu0 %246
        %248 = vrot.lane.b32.xlu0 %v207, 124
        %v249 = vpop.permute.xlu0 %248
        %250 = vrot.lane.b32.xlu0 %v208, 124
        %v251 = vpop.permute.xlu0 %250
        %252 = vrot.lane.b32.xlu0 %v209, 124
        %v253 = vpop.permute.xlu0 %252
        %254 = vrot.lane.b32.xlu0 %v210, 124
        %v255 = vpop.permute.xlu0 %254
        %256 = vrot.lane.b32.xlu0 %v211, 124
        %v257 = vpop.permute.xlu0 %256
        %258 = vrot.lane.b32.xlu0 %v212, 124
        %v259 = vpop.permute.xlu0 %258
        %260 = vrot.lane.b32.xlu0 %v213, 124
        %v261 = vpop.permute.xlu0 %260
        %v278 = vmax.f32 %v198, %v231
        %v279 = vmax.f32 %v199, %v233
        %v280 = vmax.f32 %v200, %v235
        %v281 = vmax.f32 %v201, %v237
        %v282 = vmax.f32 %v202, %v239
        %v283 = vmax.f32 %v203, %v241
        %v284 = vmax.f32 %v204, %v243
        %v285 = vmax.f32 %v205, %v245
        %v286 = vmax.f32 %v206, %v247
        %v287 = vmax.f32 %v207, %v249
        %v288 = vmax.f32 %v208, %v251
        %v289 = vmax.f32 %v209, %v253
        %v290 = vmax.f32 %v210, %v255
        %v291 = vmax.f32 %v211, %v257
        %v292 = vmax.f32 %v212, %v259
        %v293 = vmax.f32 %v213, %v261
        %v294 = vmax.f32 %v278, %v279
        %v295 = vmax.f32 %v280, %v281
        %v296 = vmax.f32 %v282, %v283
        %v297 = vmax.f32 %v284, %v285
        %v298 = vmax.f32 %v286, %v287
        %v299 = vmax.f32 %v288, %v289
        %v300 = vmax.f32 %v290, %v291
        %v301 = vmax.f32 %v292, %v293
        %vm302 = vcmask 31744
        %303 = vst.msk [vmem:[#allocation2] sm:$0xff] %vm302, 0.0
        %vm304 = vcmask 25600
        %305 = vst.msk [vmem:[#allocation2 + $0x8] sm:$0x3] %vm304, 0.0
        %306 = vst.msk [vmem:[#allocation2 + $0x10] sm:$0xff] %vm302, 0.0
        %307 = vst.msk [vmem:[#allocation2 + $0x18] sm:$0x3] %vm304, 0.0
        %308 = vst.msk [vmem:[#allocation2 + $0x20] sm:$0xff] %vm302, 0.0
        %309 = vst.msk [vmem:[#allocation2 + $0x28] sm:$0x3] %vm304, 0.0
        %310 = vst.msk [vmem:[#allocation2 + $0x30] sm:$0xff] %vm302, 0.0
        %311 = vst.msk [vmem:[#allocation2 + $0x38] sm:$0x3] %vm304, 0.0
        %312 = vst.msk [vmem:[#allocation2 + $0x40] sm:$0xff] %vm302, 0.0
        %313 = vst.msk [vmem:[#allocation2 + $0x48] sm:$0x3] %vm304, 0.0
        %314 = vst.msk [vmem:[#allocation2 + $0x50] sm:$0xff] %vm302, 0.0
        %315 = vst.msk [vmem:[#allocation2 + $0x58] sm:$0x3] %vm304, 0.0
        %316 = vst.msk [vmem:[#allocation2 + $0x60] sm:$0xff] %vm302, 0.0
        %317 = vst.msk [vmem:[#allocation2 + $0x68] sm:$0x3] %vm304, 0.0
        %318 = vst.msk [vmem:[#allocation2 + $0x70] sm:$0xff] %vm302, 0.0
        %319 = vst.msk [vmem:[#allocation2 + $0x78] sm:$0x3] %vm304, 0.0
        %320 = vst.msk [vmem:[#allocation2 + $0x80] sm:$0xff] %vm302, 0.0
        %321 = vst.msk [vmem:[#allocation2 + $0x88] sm:$0x3] %vm304, 0.0
        %322 = vst.msk [vmem:[#allocation2 + $0x90] sm:$0xff] %vm302, 0.0
        %323 = vst.msk [vmem:[#allocation2 + $0x98] sm:$0x3] %vm304, 0.0
        %s324 = scalar_lea.vmem [#allocation2], 16
        %325 = vst.msk [vmem:[%s324 + $0x1] sm:$0xff] %vm302, %v294
        %326 = vst.msk [vmem:[%s324 + $0x11] sm:$0xff] %vm302, %v295
        %327 = vst.msk [vmem:[%s324 + $0x21] sm:$0xff] %vm302, %v296
        %328 = vst.msk [vmem:[%s324 + $0x31] sm:$0xff] %vm302, %v297
        %329 = vst.msk [vmem:[%s324 + $0x41] sm:$0xff] %vm302, %v298
        %330 = vst.msk [vmem:[%s324 + $0x51] sm:$0xff] %vm302, %v299
        %331 = vst.msk [vmem:[%s324 + $0x61] sm:$0xff] %vm302, %v300
        %332 = vst.msk [vmem:[%s324 + $0x71] sm:$0xff] %vm302, %v301
      $region36: #{down_forward.2} parent=31 // pred_fallthru
        _
      %s333 = smul.u32 %s19, 8
      %s334 = smul.u32 %s333, 16
      %s335 = scalar_lea.vmem [#allocation2], %s334
      %v336 = vld [vmem:[%s335] sm:$0xff]
      %v337 = vld [vmem:[%s335 + $0x10] sm:$0xff]
      %v338 = vld [vmem:[%s335 + $0x20] sm:$0xff]
      %v339 = vld [vmem:[%s335 + $0x30] sm:$0xff]
      %v340 = vld [vmem:[%s335 + $0x40] sm:$0xff]
      %v341 = vld [vmem:[%s335 + $0x50] sm:$0xff]
      %v342 = vld [vmem:[%s335 + $0x60] sm:$0xff]
      %v343 = vld [vmem:[%s335 + $0x70] sm:$0xff]
      %v344 = vld [vmem:[%s335 + $0x1] sm:$0xff]
      %v345 = vld [vmem:[%s335 + $0x11] sm:$0xff]
      %v346 = vld [vmem:[%s335 + $0x21] sm:$0xff]
      %v347 = vld [vmem:[%s335 + $0x31] sm:$0xff]
      %v348 = vld [vmem:[%s335 + $0x41] sm:$0xff]
      %v349 = vld [vmem:[%s335 + $0x51] sm:$0xff]
      %v350 = vld [vmem:[%s335 + $0x61] sm:$0xff]
      %v351 = vld [vmem:[%s335 + $0x71] sm:$0xff]
      %v352 = vld [vmem:[%s335 + $0x2] sm:$0xff]
      %v353 = vld [vmem:[%s335 + $0x12] sm:$0xff]
      %v354 = vld [vmem:[%s335 + $0x22] sm:$0xff]
      %v355 = vld [vmem:[%s335 + $0x32] sm:$0xff]
      %v356 = vld [vmem:[%s335 + $0x42] sm:$0xff]
      %v357 = vld [vmem:[%s335 + $0x52] sm:$0xff]
      %v358 = vld [vmem:[%s335 + $0x62] sm:$0xff]
      %v359 = vld [vmem:[%s335 + $0x72] sm:$0xff]
      %s360 = sadd.s32 %s333, 1
      %s361 = smul.u32 %s360, 16
      %s362 = scalar_lea.vmem [#allocation2], %s361
      %v363 = vld [vmem:[%s362] sm:$0xff]
      %v364 = vld [vmem:[%s362 + $0x10] sm:$0xff]
      %v365 = vld [vmem:[%s362 + $0x20] sm:$0xff]
      %v366 = vld [vmem:[%s362 + $0x30] sm:$0xff]
      %v367 = vld [vmem:[%s362 + $0x40] sm:$0xff]
      %v368 = vld [vmem:[%s362 + $0x50] sm:$0xff]
      %v369 = vld [vmem:[%s362 + $0x60] sm:$0xff]
      %v370 = vld [vmem:[%s362 + $0x70] sm:$0xff]
      %v371 = vld [vmem:[%s362 + $0x1] sm:$0xff]
      %v372 = vld [vmem:[%s362 + $0x11] sm:$0xff]
      %v373 = vld [vmem:[%s362 + $0x21] sm:$0xff]
      %v374 = vld [vmem:[%s362 + $0x31] sm:$0xff]
      %v375 = vld [vmem:[%s362 + $0x41] sm:$0xff]
      %v376 = vld [vmem:[%s362 + $0x51] sm:$0xff]
      %v377 = vld [vmem:[%s362 + $0x61] sm:$0xff]
      %v378 = vld [vmem:[%s362 + $0x71] sm:$0xff]
      %v379 = vld [vmem:[%s362 + $0x2] sm:$0xff]
      %v380 = vld [vmem:[%s362 + $0x12] sm:$0xff]
      %v381 = vld [vmem:[%s362 + $0x22] sm:$0xff]
      %v382 = vld [vmem:[%s362 + $0x32] sm:$0xff]
      %v383 = vld [vmem:[%s362 + $0x42] sm:$0xff]
      %v384 = vld [vmem:[%s362 + $0x52] sm:$0xff]
      %v385 = vld [vmem:[%s362 + $0x62] sm:$0xff]
      %v386 = vld [vmem:[%s362 + $0x72] sm:$0xff]
      %s387 = sadd.s32 %s333, 2
      %s388 = smul.u32 %s387, 16
      %s389 = scalar_lea.vmem [#allocation2], %s388
      %v390 = vld [vmem:[%s389] sm:$0xff]
      %v391 = vld [vmem:[%s389 + $0x10] sm:$0xff]
      %v392 = vld [vmem:[%s389 + $0x20] sm:$0xff]
      %v393 = vld [vmem:[%s389 + $0x30] sm:$0xff]
      %v394 = vld [vmem:[%s389 + $0x40] sm:$0xff]
      %v395 = vld [vmem:[%s389 + $0x50] sm:$0xff]
      %v396 = vld [vmem:[%s389 + $0x60] sm:$0xff]
      %v397 = vld [vmem:[%s389 + $0x70] sm:$0xff]
      %v398 = vld [vmem:[%s389 + $0x1] sm:$0xff]
      %v399 = vld [vmem:[%s389 + $0x11] sm:$0xff]
      %v400 = vld [vmem:[%s389 + $0x21] sm:$0xff]
      %v401 = vld [vmem:[%s389 + $0x31] sm:$0xff]
      %v402 = vld [vmem:[%s389 + $0x41] sm:$0xff]
      %v403 = vld [vmem:[%s389 + $0x51] sm:$0xff]
      %v404 = vld [vmem:[%s389 + $0x61] sm:$0xff]
      %v405 = vld [vmem:[%s389 + $0x71] sm:$0xff]
      %v406 = vld [vmem:[%s389 + $0x2] sm:$0xff]
      %v407 = vld [vmem:[%s389 + $0x12] sm:$0xff]
      %v408 = vld [vmem:[%s389 + $0x22] sm:$0xff]
      %v409 = vld [vmem:[%s389 + $0x32] sm:$0xff]
      %v410 = vld [vmem:[%s389 + $0x42] sm:$0xff]
      %v411 = vld [vmem:[%s389 + $0x52] sm:$0xff]
      %v412 = vld [vmem:[%s389 + $0x62] sm:$0xff]
      %v413 = vld [vmem:[%s389 + $0x72] sm:$0xff]
      %422 = vrot.lane.b32.xlu0 %v344, 4
      %v423 = vpop.permute.xlu0 %422
      %424 = vrot.lane.b32.xlu0 %v345, 4
      %v425 = vpop.permute.xlu0 %424
      %426 = vrot.lane.b32.xlu0 %v346, 4
      %v427 = vpop.permute.xlu0 %426
      %428 = vrot.lane.b32.xlu0 %v347, 4
      %v429 = vpop.permute.xlu0 %428
      %430 = vrot.lane.b32.xlu0 %v348, 4
      %v431 = vpop.permute.xlu0 %430
      %432 = vrot.lane.b32.xlu0 %v349, 4
      %v433 = vpop.permute.xlu0 %432
      %434 = vrot.lane.b32.xlu0 %v350, 4
      %v435 = vpop.permute.xlu0 %434
      %436 = vrot.lane.b32.xlu0 %v351, 4
      %v437 = vpop.permute.xlu0 %436
      %454 = vrot.lane.b32.xlu0 %v352, 8
      %v455 = vpop.permute.xlu0 %454
      %456 = vrot.lane.b32.xlu0 %v353, 8
      %v457 = vpop.permute.xlu0 %456
      %458 = vrot.lane.b32.xlu0 %v354, 8
      %v459 = vpop.permute.xlu0 %458
      %460 = vrot.lane.b32.xlu0 %v355, 8
      %v461 = vpop.permute.xlu0 %460
      %462 = vrot.lane.b32.xlu0 %v356, 8
      %v463 = vpop.permute.xlu0 %462
      %464 = vrot.lane.b32.xlu0 %v357, 8
      %v465 = vpop.permute.xlu0 %464
      %466 = vrot.lane.b32.xlu0 %v358, 8
      %v467 = vpop.permute.xlu0 %466
      %468 = vrot.lane.b32.xlu0 %v359, 8
      %v469 = vpop.permute.xlu0 %468
      %486 = vrot.lane.b32.xlu0 %v363, 12
      %v487 = vpop.permute.xlu0 %486
      %488 = vrot.lane.b32.xlu0 %v364, 12
      %v489 = vpop.permute.xlu0 %488
      %490 = vrot.lane.b32.xlu0 %v365, 12
      %v491 = vpop.permute.xlu0 %490
      %492 = vrot.lane.b32.xlu0 %v366, 12
      %v493 = vpop.permute.xlu0 %492
      %494 = vrot.lane.b32.xlu0 %v367, 12
      %v495 = vpop.permute.xlu0 %494
      %496 = vrot.lane.b32.xlu0 %v368, 12
      %v497 = vpop.permute.xlu0 %496
      %498 = vrot.lane.b32.xlu0 %v369, 12
      %v499 = vpop.permute.xlu0 %498
      %500 = vrot.lane.b32.xlu0 %v370, 12
      %v501 = vpop.permute.xlu0 %500
      %518 = vrot.lane.b32.xlu0 %v371, 16
      %v519 = vpop.permute.xlu0 %518
      %520 = vrot.lane.b32.xlu0 %v372, 16
      %v521 = vpop.permute.xlu0 %520
      %522 = vrot.lane.b32.xlu0 %v373, 16
      %v523 = vpop.permute.xlu0 %522
      %524 = vrot.lane.b32.xlu0 %v374, 16
      %v525 = vpop.permute.xlu0 %524
      %526 = vrot.lane.b32.xlu0 %v375, 16
      %v527 = vpop.permute.xlu0 %526
      %528 = vrot.lane.b32.xlu0 %v376, 16
      %v529 = vpop.permute.xlu0 %528
      %530 = vrot.lane.b32.xlu0 %v377, 16
      %v531 = vpop.permute.xlu0 %530
      %532 = vrot.lane.b32.xlu0 %v378, 16
      %v533 = vpop.permute.xlu0 %532
      %550 = vrot.lane.b32.xlu0 %v379, 20
      %v551 = vpop.permute.xlu0 %550
      %552 = vrot.lane.b32.xlu0 %v380, 20
      %v553 = vpop.permute.xlu0 %552
      %554 = vrot.lane.b32.xlu0 %v381, 20
      %v555 = vpop.permute.xlu0 %554
      %556 = vrot.lane.b32.xlu0 %v382, 20
      %v557 = vpop.permute.xlu0 %556
      %558 = vrot.lane.b32.xlu0 %v383, 20
      %v559 = vpop.permute.xlu0 %558
      %560 = vrot.lane.b32.xlu0 %v384, 20
      %v561 = vpop.permute.xlu0 %560
      %562 = vrot.lane.b32.xlu0 %v385, 20
      %v563 = vpop.permute.xlu0 %562
      %564 = vrot.lane.b32.xlu0 %v386, 20
      %v565 = vpop.permute.xlu0 %564
      %582 = vrot.lane.b32.xlu0 %v390, 24
      %v583 = vpop.permute.xlu0 %582
      %584 = vrot.lane.b32.xlu0 %v391, 24
      %v585 = vpop.permute.xlu0 %584
      %586 = vrot.lane.b32.xlu0 %v392, 24
      %v587 = vpop.permute.xlu0 %586
      %588 = vrot.lane.b32.xlu0 %v393, 24
      %v589 = vpop.permute.xlu0 %588
      %590 = vrot.lane.b32.xlu0 %v394, 24
      %v591 = vpop.permute.xlu0 %590
      %592 = vrot.lane.b32.xlu0 %v395, 24
      %v593 = vpop.permute.xlu0 %592
      %594 = vrot.lane.b32.xlu0 %v396, 24
      %v595 = vpop.permute.xlu0 %594
      %596 = vrot.lane.b32.xlu0 %v397, 24
      %v597 = vpop.permute.xlu0 %596
      %614 = vrot.lane.b32.xlu0 %v398, 28
      %v615 = vpop.permute.xlu0 %614
      %616 = vrot.lane.b32.xlu0 %v399, 28
      %v617 = vpop.permute.xlu0 %616
      %618 = vrot.lane.b32.xlu0 %v400, 28
      %v619 = vpop.permute.xlu0 %618
      %620 = vrot.lane.b32.xlu0 %v401, 28
      %v621 = vpop.permute.xlu0 %620
      %622 = vrot.lane.b32.xlu0 %v402, 28
      %v623 = vpop.permute.xlu0 %622
      %624 = vrot.lane.b32.xlu0 %v403, 28
      %v625 = vpop.permute.xlu0 %624
      %626 = vrot.lane.b32.xlu0 %v404, 28
      %v627 = vpop.permute.xlu0 %626
      %628 = vrot.lane.b32.xlu0 %v405, 28
      %v629 = vpop.permute.xlu0 %628
      %646 = vrot.lane.b32.xlu0 %v406, 32
      %v647 = vpop.permute.xlu0 %646
      %648 = vrot.lane.b32.xlu0 %v407, 32
      %v649 = vpop.permute.xlu0 %648
      %650 = vrot.lane.b32.xlu0 %v408, 32
      %v651 = vpop.permute.xlu0 %650
      %652 = vrot.lane.b32.xlu0 %v409, 32
      %v653 = vpop.permute.xlu0 %652
      %654 = vrot.lane.b32.xlu0 %v410, 32
      %v655 = vpop.permute.xlu0 %654
      %656 = vrot.lane.b32.xlu0 %v411, 32
      %v657 = vpop.permute.xlu0 %656
      %658 = vrot.lane.b32.xlu0 %v412, 32
      %v659 = vpop.permute.xlu0 %658
      %660 = vrot.lane.b32.xlu0 %v413, 32
      %v661 = vpop.permute.xlu0 %660
      %vm670 = vcmask 31744
      %v671 = vsel %vm670, %v336, %v423
      %v672 = vsel %vm670, %v337, %v425
      %v673 = vsel %vm670, %v338, %v427
      %v674 = vsel %vm670, %v339, %v429
      %v675 = vsel %vm670, %v340, %v431
      %v676 = vsel %vm670, %v341, %v433
      %v677 = vsel %vm670, %v342, %v435
      %v678 = vsel %vm670, %v343, %v437
      %vm679 = vcmask 64512
      %v680 = vsel %vm679, %v671, %v455
      %v681 = vsel %vm679, %v672, %v457
      %v682 = vsel %vm679, %v673, %v459
      %v683 = vsel %vm679, %v674, %v461
      %v684 = vsel %vm679, %v675, %v463
      %v685 = vsel %vm679, %v676, %v465
      %v686 = vsel %vm679, %v677, %v467
      %v687 = vsel %vm679, %v678, %v469
      %vm688 = vcmask 97280
      %v689 = vsel %vm688, %v680, %v487
      %v690 = vsel %vm688, %v681, %v489
      %v691 = vsel %vm688, %v682, %v491
      %v692 = vsel %vm688, %v683, %v493
      %v693 = vsel %vm688, %v684, %v495
      %v694 = vsel %vm688, %v685, %v497
      %v695 = vsel %vm688, %v686, %v499
      %v696 = vsel %vm688, %v687, %v501
      %vm697 = vcmask 130048
      %v698 = vsel %vm697, %v689, %v519
      %v699 = vsel %vm697, %v690, %v521
      %v700 = vsel %vm697, %v691, %v523
      %v701 = vsel %vm697, %v692, %v525
      %v702 = vsel %vm697, %v693, %v527
      %v703 = vsel %vm697, %v694, %v529
      %v704 = vsel %vm697, %v695, %v531
      %v705 = vsel %vm697, %v696, %v533
      %vm706 = vcmask 162816
      %v707 = vsel %vm706, %v698, %v551
      %v708 = vsel %vm706, %v699, %v553
      %v709 = vsel %vm706, %v700, %v555
      %v710 = vsel %vm706, %v701, %v557
      %v711 = vsel %vm706, %v702, %v559
      %v712 = vsel %vm706, %v703, %v561
      %v713 = vsel %vm706, %v704, %v563
      %v714 = vsel %vm706, %v705, %v565
      %vm715 = vcmask 195584
      %v716 = vsel %vm715, %v707, %v583
      %v717 = vsel %vm715, %v708, %v585
      %v718 = vsel %vm715, %v709, %v587
      %v719 = vsel %vm715, %v710, %v589
      %v720 = vsel %vm715, %v711, %v591
      %v721 = vsel %vm715, %v712, %v593
      %v722 = vsel %vm715, %v713, %v595
      %v723 = vsel %vm715, %v714, %v597
      %vm724 = vcmask 228352
      %v725 = vsel %vm724, %v716, %v615
      %v726 = vsel %vm724, %v717, %v617
      %v727 = vsel %vm724, %v718, %v619
      %v728 = vsel %vm724, %v719, %v621
      %v729 = vsel %vm724, %v720, %v623
      %v730 = vsel %vm724, %v721, %v625
      %v731 = vsel %vm724, %v722, %v627
      %v732 = vsel %vm724, %v723, %v629
      %vm733 = vcmask 261120
      %v734 = vsel %vm733, %v725, %v647
      %v735 = vsel %vm733, %v726, %v649
      %v736 = vsel %vm733, %v727, %v651
      %v737 = vsel %vm733, %v728, %v653
      %v738 = vsel %vm733, %v729, %v655
      %v739 = vsel %vm733, %v730, %v657
      %v740 = vsel %vm733, %v731, %v659
      %v741 = vsel %vm733, %v732, %v661
      %v742 = vld [vmem:[%s1] sm:$0xff]
      %v743 = vld [vmem:[%s1 + $0x8] sm:$0xff]
      %v744 = vld [vmem:[%s1 + $0x10] sm:$0xff]
      %v745 = vld [vmem:[%s1 + $0x18] sm:$0xff]
      %v746 = vld [vmem:[%s1 + $0x20] sm:$0xf]
      %v747 = vld [vmem:[%s2] sm:$0x1]
      %v749 = vlaneseq
      %v750 = vshrl.u32 %v749, 7
      %v751 = vsub.s32 0, %v750
      %v752 = vrot.slane %v747, %v751
      %vm754 = vcmask 293888
      %v756 = vsel %vm754, %v734, 0
      %v759 = vsel %vm754, %v735, 0
      %v762 = vsel %vm754, %v736, 0
      %v765 = vsel %vm754, %v737, 0
      %v768 = vsel %vm754, %v738, 0
      %v771 = vsel %vm754, %v739, 0
      %v774 = vsel %vm754, %v740, 0
      %v777 = vsel %vm754, %v741, 0
      %vm779 = vcmask 1043456
      %v781 = vsel %vm779, %v746, 0
      %783 = vmatprep.subr.mxu0 0.0
      %784 = vmatpush1.msra.mxu0 0.0
      %785 = vmatprep.subr.mxu0 0.0
      %786 = vmatpush1.msra.mxu0 0.0
      %787 = vmatprep.subr.mxu0 0.0
      %788 = vmatpush1.msra.mxu0 0.0
      %789 = vmatprep.subr.mxu0 0.0
      %790 = vmatpush1.msra.mxu0 0.0
      %791 = vmatprep.subr.mxu0 0.0
      %792 = vmatpush1.msra.mxu0 0.0
      %793 = vmatprep.subr.mxu0 0.0
      %794 = vmatpush1.msra.mxu0 0.0
      %795 = vmatprep.subr.mxu0 0.0
      %796 = vmatpush1.msra.mxu0 0.0
      %797 = vmatprep.subr.mxu0 0.0
      %798 = vmatpush1.msra.mxu0 0.0
      %799 = vmatprep.subr.mxu0 0.0
      %800 = vmatpush1.msra.mxu0 0.0
      %801 = vmatprep.subr.mxu0 0.0
      %802 = vmatpush1.msra.mxu0 0.0
      %803 = vmatprep.subr.mxu0 0.0
      %804 = vmatpush1.msra.mxu0 0.0
      %805 = vmatprep.subr.mxu0 0.0
      %806 = vmatpush1.msra.mxu0 %v781
      %807 = vmatprep.subr.mxu0 0.0
      %808 = vmatpush1.msra.mxu0 %v745
      %809 = vmatprep.subr.mxu0 0.0
      %810 = vmatpush1.msra.mxu0 %v744
      %811 = vmatprep.subr.mxu0 0.0
      %812 = vmatpush1.msra.mxu0 %v743
      %813 = vmatprep.subr.mxu0 0.0
      %814 = vmatpush1.msra.mxu0 %v742
      %815 = vmatprep.subr.mxu0 0.0
      %816 = vmatpush2.msra.mxu0 0.0
      %817 = vmatprep.subr.mxu0 0.0
      %818 = vmatpush2.msra.mxu0 0.0
      %819 = vmatprep.subr.mxu0 0.0
      %820 = vmatpush2.msra.mxu0 0.0
      %821 = vmatprep.subr.mxu0 0.0
      %822 = vmatpush2.msra.mxu0 0.0
      %823 = vmatprep.subr.mxu0 0.0
      %824 = vmatpush2.msra.mxu0 0.0
      %825 = vmatprep.subr.mxu0 0.0
      %826 = vmatpush2.msra.mxu0 0.0
      %827 = vmatprep.subr.mxu0 0.0
      %828 = vmatpush2.msra.mxu0 0.0
      %829 = vmatprep.subr.mxu0 0.0
      %830 = vmatpush2.msra.mxu0 0.0
      %831 = vmatprep.subr.mxu0 0.0
      %832 = vmatpush2.msra.mxu0 0.0
      %833 = vmatprep.subr.mxu0 0.0
      %834 = vmatpush2.msra.mxu0 0.0
      %835 = vmatprep.subr.mxu0 0.0
      %836 = vmatpush2.msra.mxu0 0.0
      %837 = vmatprep.subr.mxu0 0.0
      %838 = vmatpush2.msra.mxu0 0.0
      %839 = vmatprep.subr.mxu0 0.0
      %840 = vmatpush2.msra.mxu0 0.0
      %841 = vmatprep.subr.mxu0 0.0
      %842 = vmatpush2.msra.mxu0 0.0
      %843 = vmatprep.subr.mxu0 0.0
      %844 = vmatpush2.msra.mxu0 0.0
      %845 = vmatprep.subr.mxu0 0.0
      %846 = vmatpush2.msra.mxu0 0.0
      %847 = vmatprep.mubr.f32.mxu0 0.0
      %848 = vmatmul.mubr.f32.gmra.mxu0 %v756
      %v849 = vpop.f32.mrf.mxu0
      %v850 = vadd.f32 %v752, %v849
      %v851 = vpop.f32.mrf.mxu0
      %852 = vmatprep.mubr.f32.mxu0 0.0
      %853 = vmatmul.mubr.f32.gmra.mxu0 %v759
      %v854 = vpop.f32.mrf.mxu0
      %v855 = vadd.f32 %v752, %v854
      %v856 = vpop.f32.mrf.mxu0
      %857 = vmatprep.mubr.f32.mxu0 0.0
      %858 = vmatmul.mubr.f32.gmra.mxu0 %v762
      %v859 = vpop.f32.mrf.mxu0
      %v860 = vadd.f32 %v752, %v859
      %v861 = vpop.f32.mrf.mxu0
      %862 = vmatprep.mubr.f32.mxu0 0.0
      %863 = vmatmul.mubr.f32.gmra.mxu0 %v765
      %v864 = vpop.f32.mrf.mxu0
      %v865 = vadd.f32 %v752, %v864
      %v866 = vpop.f32.mrf.mxu0
      %867 = vmatprep.mubr.f32.mxu0 0.0
      %868 = vmatmul.mubr.f32.gmra.mxu0 %v768
      %v869 = vpop.f32.mrf.mxu0
      %v870 = vadd.f32 %v752, %v869
      %v871 = vpop.f32.mrf.mxu0
      %872 = vmatprep.mubr.f32.mxu0 0.0
      %873 = vmatmul.mubr.f32.gmra.mxu0 %v771
      %v874 = vpop.f32.mrf.mxu0
      %v875 = vadd.f32 %v752, %v874
      %v876 = vpop.f32.mrf.mxu0
      %877 = vmatprep.mubr.f32.mxu0 0.0
      %878 = vmatmul.mubr.f32.gmra.mxu0 %v774
      %v879 = vpop.f32.mrf.mxu0
      %v880 = vadd.f32 %v752, %v879
      %v881 = vpop.f32.mrf.mxu0
      %882 = vmatprep.mubr.f32.mxu0 0.0
      %883 = vmatmul.mubr.f32.gmra.mxu0 %v777
      %v884 = vpop.f32.mrf.mxu0
      %v885 = vadd.f32 %v752, %v884
      %v886 = vpop.f32.mrf.mxu0
      %887 = vdwg.mxu0
      %v888 = vmax.f32 %v850, 0.0
      %v889 = vmax.f32 %v855, 0.0
      %v890 = vmax.f32 %v860, 0.0
      %v891 = vmax.f32 %v865, 0.0
      %v892 = vmax.f32 %v870, 0.0
      %v893 = vmax.f32 %v875, 0.0
      %v894 = vmax.f32 %v880, 0.0
      %v895 = vmax.f32 %v885, 0.0
      %896 = vst [vmem:[%s192] sm:$0xff] %v888
      %897 = vst [vmem:[%s192 + $0x8] sm:$0xff] %v889
      %898 = vst [vmem:[%s192 + $0x10] sm:$0xff] %v890
      %899 = vst [vmem:[%s192 + $0x18] sm:$0xff] %v891
      %900 = vst [vmem:[%s192 + $0x20] sm:$0xff] %v892
      %901 = vst [vmem:[%s192 + $0x28] sm:$0xff] %v893
      %902 = vst [vmem:[%s192 + $0x30] sm:$0xff] %v894
      %903 = vst [vmem:[%s192 + $0x38] sm:$0xff] %v895
      %s904 = smul.u32 8, %s19
      %p905 = scmp.lt.s32.totalorder %s18, 1
      %s906 = scalar_select %p905, %s18, 1
      %p907 = scmp.lt.s32.totalorder %s904, 7
      %s908 = scalar_select %p907, %s904, 7
      %s909 = smul.addr %s906, 8
      %s910 = sadd.s32 %s908, %s909
      %s911 = smul.addr %s910, 8
      %s912 = scalar_lea.vmem %s3, %s911
      // Predicated region
      $region37: #{down_forward.2} parent=31 // pred_check
        %p913 = pneg %p114
      $region38: #{down_forward.2} parent=31 // pred_check_branch
        %915 = sbr.rel (%p913) target = $region40
      $region39: #{down_forward.2} parent=31 // pred_region
        %s916 = smul.u32 8, %s19
      $region40: #{down_forward.2} parent=31 // pred_fallthru
        _
    $region32: #{down_forward.2} parent=5 // pred_fallthru
      _
    %p917 = scmp.le.s32.totalorder 2, %s9
    // Predicated region
    $region41: #{down_forward.2} parent=5 // pred_check
      %p918 = pneg %p917
    $region42: #{down_forward.2} parent=5 // pred_check_branch
      %920 = sbr.rel (%p918) target = $region44
    $region43: #{down_forward.2} parent=5 // pred_region
      %s921 = ssub.s32 %s9, 2
      // Predicated region
      $region45: #{down_forward.2} parent=43 // pred_check
        %p922 = pneg %p120
      $region46: #{down_forward.2} parent=43 // pred_check_branch
        %924 = sbr.rel (%p922) target = $region48
      $region47: #{down_forward.2} parent=43 // pred_region
        %s925 = smul.u32 8, %s21
        %p926 = scmp.lt.s32.totalorder %s20, 1
        %s927 = scalar_select %p926, %s20, 1
        %p928 = scmp.lt.s32.totalorder %s925, 7
        %s929 = scalar_select %p928, %s925, 7
        %s930 = smul.addr %s927, 8
        %s931 = sadd.s32 %s929, %s930
        %s932 = smul.addr %s931, 8
        %s933 = scalar_lea.vmem %s3, %s932
      $region48: #{down_forward.2} parent=43 // pred_fallthru
        _
    $region44: #{down_forward.2} parent=5 // pred_fallthru
      _
  $region6: #{down_forward.2} parent=0 // loop_footer
    %s13 = sadd.s32 1, %s9
  $region7: #{down_forward.2} parent=0 // loop_footer_branch
    %8 = sbr.rel target = $region3
  $region8: #{down_forward.2} parent=0 // loop_exit
    _

// kernel: down_forward.3
$region0: #{down_forward.3}
  #allocation0 [shape = 'u32[]', space=smem, size = 0x4, offset = 0x4, fixed_abs, tag = 'smem constant byte address 0x4 - core index']
  #allocation1 [shape = 'u32[144,128]{1,0:T(1,128)}', space=vmem, size = 0x12000, scoped, tag = 'internal scratch']
  #allocation2 [shape = 'f32[10,10,128]{2,1,0:T(8,128)}', space=vmem, size = 0x14000, scoped, tag = 'scratch operand']
  %s0 = inlined_call_operand.vmem [shape: f32[2,8,8,128], index: 0, kind: input, shape index: {}]
  %s1 = inlined_call_operand.hbm [shape: f32[1152,128], index: 1, kind: input, shape index: {}]
  %s2 = inlined_call_operand.vmem [shape: f32[1,128], index: 2, kind: input, shape index: {}]
  %s3 = inlined_call_operand.vmem [shape: f32[2,8,8,128], index: 3, kind: output, shape index: {}]
  %s4 = sld [smem:[#allocation0]]
  $region53: #{down_forward.3} parent=0
    _
  %s6 = ssub.s32 1, %s4
  %s7 = scalar_select 0, %s6, %s4
  $region1: #{down_forward.3} parent=0
    #allocation3 [shape = 'u8[589824]{0}', space=vmem, size = 0x90000, scoped, tag = 'input window, operand 1, single buffered']
    #allocation4 [shape = 's32[2]{0}', space=sflag, size = 0x8, scoped, tag = 'scoped memory for down_forward.3']
    %8 = vsyncpa [#allocation4], 0
    loop: start=0, step=1, limit=4
    $region2: #{down_forward.3} parent=1 // loop_pre_header
      _
    $region3: #{down_forward.3} parent=1 // loop_header
      %s10 = sphi 0, %s14
      %p11 = scmp.ge.s32.totalorder %s10, 4
      %s17 = sphi 0, %s29
      %s18 = sphi 0, %s25
      %s19 = sphi 0, %s17
      %s20 = sphi 0, %s18
      %s21 = sphi 0, %s19
      %s22 = sphi 0, %s20
      %s32 = sphi 0, %s34
      %s35 = sphi 0, %s32
      %s36 = sphi 0, %s35
      %s52 = sphi 0, %s36
      %s56 = sphi 0, %s56
      %s58 = sphi 0, %s56
      %s59 = sphi 0, %s58
      %s73 = sphi 0, %s59
      %s77 = sphi 0, %s77
      %s79 = sphi 0, %s77
      %s80 = sphi 0, %s79
      %s94 = sphi 0, %s80
      %s102 = sphi 0, %s104
      %s105 = sphi 0, %s102
      %s106 = sphi 0, %s105
      %s122 = sphi 0, %s106
    $region4: #{down_forward.3} parent=1 // loop_header_branch
      %13 = sbr.rel (%p11) target = $region8
    $region5: #{down_forward.3} parent=1 // loop_body
      %s15 = ssub.s32 %s10, 1
      %s16 = ssub.s32 %s10, 2
      %s23 = sadd.s32 1, %s18
      %p24 = scmp.ge.s32.totalorder %s23, 1
      %s25 = scalar_select %p24, 0, %s23
      %s26 = sadd.s32 1, %s17
      %s27 = scalar_select %p24, %s26, %s17
      %p28 = scmp.ge.s32.totalorder %s27, 2
      %s29 = scalar_select %p28, 0, %s27
      %s30 = ssub.s32 %s17, %s29
      %p31 = scmp.eq.s32.totalorder %s30, 0
      %s33 = sadd.s32 %s32, 1
      %s34 = scalar_select %p31, %s32, %s33
      %p37 = pneg %p31
      %p38 = scmp.eq.s32.totalorder %s10, 1
      %p39 = por %p37, %p38
      %p40 = scmp.ne.s32.totalorder %s32, %s35
      %p41 = scmp.eq.s32.totalorder %s10, 0
      %p42 = por %p40, %p41
      %p43 = scmp.ne.s32.totalorder %s32, %s35
      %p44 = scmp.eq.s32.totalorder %s15, 1
      %p45 = por %p43, %p44
      %p46 = scmp.ne.s32.totalorder %s35, %s36
      %p47 = scmp.eq.s32.totalorder %s15, 0
      %p48 = por %p46, %p47
      %p49 = scmp.ne.s32.totalorder %s35, %s36
      %p50 = scmp.eq.s32.totalorder %s16, 1
      %p51 = por %p49, %p50
      %p53 = scmp.ne.s32.totalorder %s36, %s52
      %p54 = scmp.eq.s32.totalorder %s16, 0
      %p55 = por %p53, %p54
      %s57 = sadd.s32 %s56, 1
      %p60 = scmp.eq.s32.totalorder %s10, 1
      %p61 = scmp.ne.s32.totalorder %s56, %s58
      %p62 = scmp.eq.s32.totalorder %s10, 0
      %p63 = por %p61, %p62
      %p64 = scmp.ne.s32.totalorder %s56, %s58
      %p65 = scmp.eq.s32.totalorder %s15, 1
      %p66 = por %p64, %p65
      %p67 = scmp.ne.s32.totalorder %s58, %s59
      %p68 = scmp.eq.s32.totalorder %s15, 0
      %p69 = por %p67, %p68
      %p70 = scmp.ne.s32.totalorder %s58, %s59
      %p71 = scmp.eq.s32.totalorder %s16, 1
      %p72 = por %p70, %p71
      %p74 = scmp.ne.s32.totalorder %s59, %s73
      %p75 = scmp.eq.s32.totalorder %s16, 0
      %p76 = por %p74, %p75
      %s78 = sadd.s32 %s77, 1
      %p81 = scmp.eq.s32.totalorder %s10, 1
      %p82 = scmp.ne.s32.totalorder %s77, %s79
      %p83 = scmp.eq.s32.totalorder %s10, 0
      %p84 = por %p82, %p83
      %p85 = scmp.ne.s32.totalorder %s77, %s79
      %p86 = scmp.eq.s32.totalorder %s15, 1
      %p87 = por %p85, %p86
      %p88 = scmp.ne.s32.totalorder %s79, %s80
      %p89 = scmp.eq.s32.totalorder %s15, 0
      %p90 = por %p88, %p89
      %p91 = scmp.ne.s32.totalorder %s79, %s80
      %p92 = scmp.eq.s32.totalorder %s16, 1
      %p93 = por %p91, %p92
      %p95 = scmp.ne.s32.totalorder %s80, %s94
      %p96 = scmp.eq.s32.totalorder %s16, 0
      %p97 = por %p95, %p96
      %s98 = ssub.s32 %s17, %s29
      %s99 = ssub.s32 %s18, %s25
      %s100 = sor.u32 %s98, %s99
      %p101 = scmp.eq.s32.totalorder %s100, 0
      %s103 = sadd.s32 %s102, 1
      %s104 = scalar_select %p101, %s102, %s103
      %p107 = pneg %p101
      %p108 = scmp.eq.s32.totalorder %s10, 1
      %p109 = por %p107, %p108
      %p110 = scmp.ne.s32.totalorder %s102, %s105
      %p111 = scmp.eq.s32.totalorder %s10, 0
      %p112 = por %p110, %p111
      %p113 = scmp.ne.s32.totalorder %s102, %s105
      %p114 = scmp.eq.s32.totalorder %s15, 1
      %p115 = por %p113, %p114
      %p116 = scmp.ne.s32.totalorder %s105, %s106
      %p117 = scmp.eq.s32.totalorder %s15, 0
      %p118 = por %p116, %p117
      %p119 = scmp.ne.s32.totalorder %s105, %s106
      %p120 = scmp.eq.s32.totalorder %s16, 1
      %p121 = por %p119, %p120
      %p123 = scmp.ne.s32.totalorder %s106, %s122
      %p124 = scmp.eq.s32.totalorder %s16, 0
      %p125 = por %p123, %p124
      %p126 = scmp.le.s32.totalorder 1, %s10
      %p127 = scmp.lt.s32.totalorder %s10, 3
      %p128 = pnand %p126, %p127
      %p129 = pneg %p128
      // Predicated region
      $region9: #{down_forward.3} parent=5 // pred_check
        _
      $region10: #{down_forward.3} parent=5 // pred_check_branch
        %131 = sbr.rel (%p128) target = $region12
      $region11: #{down_forward.3} parent=5 // pred_region
        %s132 = ssub.s32 %s10, 1
        // Predicated region
        $region13: #{down_forward.3} parent=11 // pred_check
          %p133 = pneg %p69
        $region14: #{down_forward.3} parent=11 // pred_check_branch
          %135 = sbr.rel (%p133) target = $region16
        $region15: #{down_forward.3} parent=11 // pred_region
          %s137 = ssub.s32 18432, 18432
          %138 = vsyncadd [#allocation4], %s137
          %s139 = sshll.u32 [#allocation3], 4
          %s140 = int_to_ptr.vmem [resolvable:$true] %s139
          %145 = dma.hbm_to_vmem [thread:$0]  %s1, 18432, %s140, [#allocation4], 128, 128, 8
        $region16: #{down_forward.3} parent=11 // pred_fallthru
          _
        // Predicated region
        $region17: #{down_forward.3} parent=11 // pred_check
          %p146 = pneg %p90
        $region18: #{down_forward.3} parent=11 // pred_check_branch
          %148 = sbr.rel (%p146) target = $region20
        $region19: #{down_forward.3} parent=11 // pred_region
          _
        $region20: #{down_forward.3} parent=11 // pred_fallthru
          _
      $region12: #{down_forward.3} parent=5 // pred_fallthru
        _
      %p149 = scmp.lt.s32.totalorder %s10, 2
      // Predicated region
      $region21: #{down_forward.3} parent=5 // pred_check
        %p150 = pneg %p149
      $region22: #{down_forward.3} parent=5 // pred_check_branch
        %152 = sbr.rel (%p150) target = $region24
      $region23: #{down_forward.3} parent=5 // pred_region
        // Predicated region
        $region25: #{down_forward.3} parent=23 // pred_check
          %p153 = pneg %p42
        $region26: #{down_forward.3} parent=23 // pred_check_branch
          %155 = sbr.rel (%p153) target = $region28
        $region27: #{down_forward.3} parent=23 // pred_region
          %p156 = scmp.lt.s32.totalorder %s17, 1
          %s157 = scalar_select %p156, %s17, 1
          %s158 = smul.addr %s157, 8
          %s159 = smul.addr %s158, 8
          %s160 = scalar_lea.vmem %s0, %s159
        $region28: #{down_forward.3} parent=23 // pred_fallthru
          _
      $region24: #{down_forward.3} parent=5 // pred_fallthru
        _
      %p161 = scmp.le.s32.totalorder 1, %s10
      %p162 = scmp.lt.s32.totalorder %s10, 3
      %p163 = pnand %p161, %p162
      %p164 = pneg %p163
      // Predicated region
      $region29: #{down_forward.3} parent=5 // pred_check
        _
      $region30: #{down_forward.3} parent=5 // pred_check_branch
        %166 = sbr.rel (%p163) target = $region32
      $region31: #{down_forward.3} parent=5 // pred_region
        %s167 = ssub.s32 %s10, 1
        // Predicated region
        $region33: #{down_forward.3} parent=31 // pred_check
          %p168 = pneg %p69
        $region34: #{down_forward.3} parent=31 // pred_check_branch
          %170 = sbr.rel (%p168) target = $region36
        $region35: #{down_forward.3} parent=31 // pred_region
          %171 = dma.done [#allocation4], 18432
        $region36: #{down_forward.3} parent=31 // pred_fallthru
          _
        %p172 = scmp.lt.s32.totalorder %s19, 1
        %s173 = scalar_select %p172, %s19, 1
        %s174 = smul.addr %s173, 8
        %s175 = smul.addr %s174, 8
        %s176 = scalar_lea.vmem %s0, %s175
        %p177 = pneg %p48
        %p178 = pneg %p45
        %p179 = pneg %p69
        %p180 = pneg %p66
        %p181 = pneg %p90
        %p182 = pneg %p87
        %p183 = pneg %p118
        %p184 = pneg %p115
        %s185 = smul.u32 8, %s20
        %p186 = scmp.lt.s32.totalorder %s19, 1
        %s187 = scalar_select %p186, %s19, 1
        %p188 = scmp.lt.s32.totalorder %s185, 7
        %s189 = scalar_select %p188, %s185, 7
        %s190 = smul.addr %s187, 8
        %s191 = sadd.s32 %s189, %s190
        %s192 = smul.addr %s191, 8
        %s193 = scalar_lea.vmem %s3, %s192
        %p194 = scmp.lt.s32.totalorder %s19, 1
        %s195 = scalar_select %p194, %s19, 1
        %s196 = smul.addr %s195, 8
        %s197 = smul.addr %s196, 8
        %s198 = scalar_lea.vmem %s0, %s197
        %s199 = smul.u32 8, %s20
        %p200 = scmp.lt.s32.totalorder %s19, 1
        %s201 = scalar_select %p200, %s19, 1
        %p202 = scmp.lt.s32.totalorder %s199, 7
        %s203 = scalar_select %p202, %s199, 7
        %s204 = smul.addr %s201, 8
        %s205 = sadd.s32 %s203, %s204
        %s206 = smul.addr %s205, 8
        %s207 = scalar_lea.vmem %s3, %s206
        %s208 = smul.u32 8, %s20
        %p209 = scmp.eq.s32.totalorder %s20, 0
        // Predicated region
        $region37: #{down_forward.3} parent=31 // pred_check
          %p210 = pneg %p209
        $region38: #{down_forward.3} parent=31 // pred_check_branch
          %212 = sbr.rel (%p210) target = $region40
        $region39: #{down_forward.3} parent=31 // pred_region
          %v213 = vld [vmem:[%s198] sm:$0xff]
          %v214 = vld [vmem:[%s198 + $0x8] sm:$0xff]
          %v215 = vld [vmem:[%s198 + $0x10] sm:$0xff]
          %v216 = vld [vmem:[%s198 + $0x18] sm:$0xff]
          %v217 = vld [vmem:[%s198 + $0x20] sm:$0xff]
          %v218 = vld [vmem:[%s198 + $0x28] sm:$0xff]
          %v219 = vld [vmem:[%s198 + $0x30] sm:$0xff]
          %v220 = vld [vmem:[%s198 + $0x38] sm:$0xff]
          %221 = vst [vmem:[#allocation2] sm:$0xff] 0.0
          %222 = vst [vmem:[#allocation2 + $0x8] sm:$0x3] 0.0
          %223 = vst [vmem:[#allocation2 + $0x10] sm:$0xff] 0.0
          %224 = vst [vmem:[#allocation2 + $0x18] sm:$0x3] 0.0
          %225 = vst [vmem:[#allocation2 + $0x20] sm:$0xff] 0.0
          %226 = vst [vmem:[#allocation2 + $0x28] sm:$0x3] 0.0
          %227 = vst [vmem:[#allocation2 + $0x30] sm:$0xff] 0.0
          %228 = vst [vmem:[#allocation2 + $0x38] sm:$0x3] 0.0
          %229 = vst [vmem:[#allocation2 + $0x40] sm:$0xff] 0.0
          %230 = vst [vmem:[#allocation2 + $0x48] sm:$0x3] 0.0
          %231 = vst [vmem:[#allocation2 + $0x50] sm:$0xff] 0.0
          %232 = vst [vmem:[#allocation2 + $0x58] sm:$0x3] 0.0
          %233 = vst [vmem:[#allocation2 + $0x60] sm:$0xff] 0.0
          %234 = vst [vmem:[#allocation2 + $0x68] sm:$0x3] 0.0
          %235 = vst [vmem:[#allocation2 + $0x70] sm:$0xff] 0.0
          %236 = vst [vmem:[#allocation2 + $0x78] sm:$0x3] 0.0
          %237 = vst [vmem:[#allocation2 + $0x80] sm:$0xff] 0.0
          %238 = vst [vmem:[#allocation2 + $0x88] sm:$0x3] 0.0
          %239 = vst [vmem:[#allocation2 + $0x90] sm:$0xff] 0.0
          %240 = vst [vmem:[#allocation2 + $0x98] sm:$0x3] 0.0
          %s241 = scalar_lea.vmem [#allocation2], 16
          %242 = vst [vmem:[%s241 + $0x1] sm:$0xff] %v213
          %243 = vst [vmem:[%s241 + $0x11] sm:$0xff] %v214
          %244 = vst [vmem:[%s241 + $0x21] sm:$0xff] %v215
          %245 = vst [vmem:[%s241 + $0x31] sm:$0xff] %v216
          %246 = vst [vmem:[%s241 + $0x41] sm:$0xff] %v217
          %247 = vst [vmem:[%s241 + $0x51] sm:$0xff] %v218
          %248 = vst [vmem:[%s241 + $0x61] sm:$0xff] %v219
          %249 = vst [vmem:[%s241 + $0x71] sm:$0xff] %v220
        $region40: #{down_forward.3} parent=31 // pred_fallthru
          _
        %s250 = smul.u32 %s20, 8
        %s251 = smul.u32 %s250, 16
        %s252 = scalar_lea.vmem [#allocation2], %s251
        %v253 = vld [vmem:[%s252] sm:$0xff]
        %v254 = vld [vmem:[%s252 + $0x10] sm:$0xff]
        %v255 = vld [vmem:[%s252 + $0x20] sm:$0xff]
        %v256 = vld [vmem:[%s252 + $0x30] sm:$0xff]
        %v257 = vld [vmem:[%s252 + $0x40] sm:$0xff]
        %v258 = vld [vmem:[%s252 + $0x50] sm:$0xff]
        %v259 = vld [vmem:[%s252 + $0x60] sm:$0xff]
        %v260 = vld [vmem:[%s252 + $0x70] sm:$0xff]
        %v261 = vld [vmem:[%s252 + $0x1] sm:$0xff]
        %v262 = vld [vmem:[%s252 + $0x11] sm:$0xff]
        %v263 = vld [vmem:[%s252 + $0x21] sm:$0xff]
        %v264 = vld [vmem:[%s252 + $0x31] sm:$0xff]
        %v265 = vld [vmem:[%s252 + $0x41] sm:$0xff]
        %v266 = vld [vmem:[%s252 + $0x51] sm:$0xff]
        %v267 = vld [vmem:[%s252 + $0x61] sm:$0xff]
        %v268 = vld [vmem:[%s252 + $0x71] sm:$0xff]
        %v269 = vld [vmem:[%s252 + $0x2] sm:$0xff]
        %v270 = vld [vmem:[%s252 + $0x12] sm:$0xff]
        %v271 = vld [vmem:[%s252 + $0x22] sm:$0xff]
        %v272 = vld [vmem:[%s252 + $0x32] sm:$0xff]
        %v273 = vld [vmem:[%s252 + $0x42] sm:$0xff]
        %v274 = vld [vmem:[%s252 + $0x52] sm:$0xff]
        %v275 = vld [vmem:[%s252 + $0x62] sm:$0xff]
        %v276 = vld [vmem:[%s252 + $0x72] sm:$0xff]
        %s277 = sadd.s32 %s250, 1
        %s278 = smul.u32 %s277, 16
        %s279 = scalar_lea.vmem [#allocation2], %s278
        %v280 = vld [vmem:[%s279] sm:$0xff]
        %v281 = vld [vmem:[%s279 + $0x10] sm:$0xff]
        %v282 = vld [vmem:[%s279 + $0x20] sm:$0xff]
        %v283 = vld [vmem:[%s279 + $0x30] sm:$0xff]
        %v284 = vld [vmem:[%s279 + $0x40] sm:$0xff]
        %v285 = vld [vmem:[%s279 + $0x50] sm:$0xff]
        %v286 = vld [vmem:[%s279 + $0x60] sm:$0xff]
        %v287 = vld [vmem:[%s279 + $0x70] sm:$0xff]
        %v288 = vld [vmem:[%s279 + $0x1] sm:$0xff]
        %v289 = vld [vmem:[%s279 + $0x11] sm:$0xff]
        %v290 = vld [vmem:[%s279 + $0x21] sm:$0xff]
        %v291 = vld [vmem:[%s279 + $0x31] sm:$0xff]
        %v292 = vld [vmem:[%s279 + $0x41] sm:$0xff]
        %v293 = vld [vmem:[%s279 + $0x51] sm:$0xff]
        %v294 = vld [vmem:[%s279 + $0x61] sm:$0xff]
        %v295 = vld [vmem:[%s279 + $0x71] sm:$0xff]
        %v296 = vld [vmem:[%s279 + $0x2] sm:$0xff]
        %v297 = vld [vmem:[%s279 + $0x12] sm:$0xff]
        %v298 = vld [vmem:[%s279 + $0x22] sm:$0xff]
        %v299 = vld [vmem:[%s279 + $0x32] sm:$0xff]
        %v300 = vld [vmem:[%s279 + $0x42] sm:$0xff]
        %v301 = vld [vmem:[%s279 + $0x52] sm:$0xff]
        %v302 = vld [vmem:[%s279 + $0x62] sm:$0xff]
        %v303 = vld [vmem:[%s279 + $0x72] sm:$0xff]
        %s304 = sadd.s32 %s250, 2
        %s305 = smul.u32 %s304, 16
        %s306 = scalar_lea.vmem [#allocation2], %s305
        %v307 = vld [vmem:[%s306] sm:$0xff]
        %v308 = vld [vmem:[%s306 + $0x10] sm:$0xff]
        %v309 = vld [vmem:[%s306 + $0x20] sm:$0xff]
        %v310 = vld [vmem:[%s306 + $0x30] sm:$0xff]
        %v311 = vld [vmem:[%s306 + $0x40] sm:$0xff]
        %v312 = vld [vmem:[%s306 + $0x50] sm:$0xff]
        %v313 = vld [vmem:[%s306 + $0x60] sm:$0xff]
        %v314 = vld [vmem:[%s306 + $0x70] sm:$0xff]
        %v315 = vld [vmem:[%s306 + $0x1] sm:$0xff]
        %v316 = vld [vmem:[%s306 + $0x11] sm:$0xff]
        %v317 = vld [vmem:[%s306 + $0x21] sm:$0xff]
        %v318 = vld [vmem:[%s306 + $0x31] sm:$0xff]
        %v319 = vld [vmem:[%s306 + $0x41] sm:$0xff]
        %v320 = vld [vmem:[%s306 + $0x51] sm:$0xff]
        %v321 = vld [vmem:[%s306 + $0x61] sm:$0xff]
        %v322 = vld [vmem:[%s306 + $0x71] sm:$0xff]
        %v323 = vld [vmem:[%s306 + $0x2] sm:$0xff]
        %v324 = vld [vmem:[%s306 + $0x12] sm:$0xff]
        %v325 = vld [vmem:[%s306 + $0x22] sm:$0xff]
        %v326 = vld [vmem:[%s306 + $0x32] sm:$0xff]
        %v327 = vld [vmem:[%s306 + $0x42] sm:$0xff]
        %v328 = vld [vmem:[%s306 + $0x52] sm:$0xff]
        %v329 = vld [vmem:[%s306 + $0x62] sm:$0xff]
        %v330 = vld [vmem:[%s306 + $0x72] sm:$0xff]
        %v331 = vld [vmem:[#allocation3] sm:$0xff]
        %v332 = vld [vmem:[#allocation3 + $0x8] sm:$0xff]
        %v333 = vld [vmem:[#allocation3 + $0x10] sm:$0xff]
        %v334 = vld [vmem:[#allocation3 + $0x18] sm:$0xff]
        %v335 = vld [vmem:[#allocation3 + $0x20] sm:$0xff]
        %v336 = vld [vmem:[#allocation3 + $0x28] sm:$0xff]
        %v337 = vld [vmem:[#allocation3 + $0x30] sm:$0xff]
        %v338 = vld [vmem:[#allocation3 + $0x38] sm:$0xff]
        %v339 = vld [vmem:[#allocation3 + $0x40] sm:$0xff]
        %v340 = vld [vmem:[#allocation3 + $0x48] sm:$0xff]
        %v341 = vld [vmem:[#allocation3 + $0x50] sm:$0xff]
        %v342 = vld [vmem:[#allocation3 + $0x58] sm:$0xff]
        %v343 = vld [vmem:[#allocation3 + $0x60] sm:$0xff]
        %v344 = vld [vmem:[#allocation3 + $0x68] sm:$0xff]
        %v345 = vld [vmem:[#allocation3 + $0x70] sm:$0xff]
        %v346 = vld [vmem:[#allocation3 + $0x78] sm:$0xff]
        %v347 = vld [vmem:[#allocation3 + $0x80] sm:$0xff]
        %v348 = vld [vmem:[#allocation3 + $0x88] sm:$0xff]
        %v349 = vld [vmem:[#allocation3 + $0x90] sm:$0xff]
        %v350 = vld [vmem:[#allocation3 + $0x98] sm:$0xff]
        %v351 = vld [vmem:[#allocation3 + $0xa0] sm:$0xff]
        %v352 = vld [vmem:[#allocation3 + $0xa8] sm:$0xff]
        %v353 = vld [vmem:[#allocation3 + $0xb0] sm:$0xff]
        %v354 = vld [vmem:[#allocation3 + $0xb8] sm:$0xff]
        %v355 = vld [vmem:[#allocation3 + $0xc0] sm:$0xff]
        %v356 = vld [vmem:[#allocation3 + $0xc8] sm:$0xff]
        %v357 = vld [vmem:[#allocation3 + $0xd0] sm:$0xff]
        %v358 = vld [vmem:[#allocation3 + $0xd8] sm:$0xff]
        %v359 = vld [vmem:[#allocation3 + $0xe0] sm:$0xff]
        %v360 = vld [vmem:[#allocation3 + $0xe8] sm:$0xff]
        %v361 = vld [vmem:[#allocation3 + $0xf0] sm:$0xff]
        %v362 = vld [vmem:[#allocation3 + $0xf8] sm:$0xff]
        %v363 = vld [vmem:[#allocation3 + $0x100] sm:$0xff]
        %v364 = vld [vmem:[#allocation3 + $0x108] sm:$0xff]
        %v365 = vld [vmem:[#allocation3 + $0x110] sm:$0xff]
        %v366 = vld [vmem:[#allocation3 + $0x118] sm:$0xff]
        %v367 = vld [vmem:[#allocation3 + $0x120] sm:$0xff]
        %v368 = vld [vmem:[#allocation3 + $0x128] sm:$0xff]
        %v369 = vld [vmem:[#allocation3 + $0x130] sm:$0xff]
        %v370 = vld [vmem:[#allocation3 + $0x138] sm:$0xff]
        %v371 = vld [vmem:[#allocation3 + $0x140] sm:$0xff]
        %v372 = vld [vmem:[#allocation3 + $0x148] sm:$0xff]
        %v373 = vld [vmem:[#allocation3 + $0x150] sm:$0xff]
        %v374 = vld [vmem:[#allocation3 + $0x158] sm:$0xff]
        %v375 = vld [vmem:[#allocation3 + $0x160] sm:$0xff]
        %v376 = vld [vmem:[#allocation3 + $0x168] sm:$0xff]
        %v377 = vld [vmem:[#allocation3 + $0x170] sm:$0xff]
        %v378 = vld [vmem:[#allocation3 + $0x178] sm:$0xff]
        %v379 = vld [vmem:[#allocation3 + $0x180] sm:$0xff]
        %v380 = vld [vmem:[#allocation3 + $0x188] sm:$0xff]
        %v381 = vld [vmem:[#allocation3 + $0x190] sm:$0xff]
        %v382 = vld [vmem:[#allocation3 + $0x198] sm:$0xff]
        %v383 = vld [vmem:[#allocation3 + $0x1a0] sm:$0xff]
        %v384 = vld [vmem:[#allocation3 + $0x1a8] sm:$0xff]
        %v385 = vld [vmem:[#allocation3 + $0x1b0] sm:$0xff]
        %v386 = vld [vmem:[#allocation3 + $0x1b8] sm:$0xff]
        %v387 = vld [vmem:[#allocation3 + $0x1c0] sm:$0xff]
        %v388 = vld [vmem:[#allocation3 + $0x1c8] sm:$0xff]
        %v389 = vld [vmem:[#allocation3 + $0x1d0] sm:$0xff]
        %v390 = vld [vmem:[#allocation3 + $0x1d8] sm:$0xff]
        %v391 = vld [vmem:[#allocation3 + $0x1e0] sm:$0xff]
        %v392 = vld [vmem:[#allocation3 + $0x1e8] sm:$0xff]
        %v393 = vld [vmem:[#allocation3 + $0x1f0] sm:$0xff]
        %v394 = vld [vmem:[#allocation3 + $0x1f8] sm:$0xff]
        %v395 = vld [vmem:[#allocation3 + $0x200] sm:$0xff]
        %v396 = vld [vmem:[#allocation3 + $0x208] sm:$0xff]
        %v397 = vld [vmem:[#allocation3 + $0x210] sm:$0xff]
        %v398 = vld [vmem:[#allocation3 + $0x218] sm:$0xff]
        %v399 = vld [vmem:[#allocation3 + $0x220] sm:$0xff]
        %v400 = vld [vmem:[#allocation3 + $0x228] sm:$0xff]
        %v401 = vld [vmem:[#allocation3 + $0x230] sm:$0xff]
        %v402 = vld [vmem:[#allocation3 + $0x238] sm:$0xff]
        %v403 = vld [vmem:[#allocation3 + $0x240] sm:$0xff]
        %v404 = vld [vmem:[#allocation3 + $0x248] sm:$0xff]
        %v405 = vld [vmem:[#allocation3 + $0x250] sm:$0xff]
        %v406 = vld [vmem:[#allocation3 + $0x258] sm:$0xff]
        %v407 = vld [vmem:[#allocation3 + $0x260] sm:$0xff]
        %v408 = vld [vmem:[#allocation3 + $0x268] sm:$0xff]
        %v409 = vld [vmem:[#allocation3 + $0x270] sm:$0xff]
        %v410 = vld [vmem:[#allocation3 + $0x278] sm:$0xff]
        %v411 = vld [vmem:[#allocation3 + $0x280] sm:$0xff]
        %v412 = vld [vmem:[#allocation3 + $0x288] sm:$0xff]
        %v413 = vld [vmem:[#allocation3 + $0x290] sm:$0xff]
        %v414 = vld [vmem:[#allocation3 + $0x298] sm:$0xff]
        %v415 = vld [vmem:[#allocation3 + $0x2a0] sm:$0xff]
        %v416 = vld [vmem:[#allocation3 + $0x2a8] sm:$0xff]
        %v417 = vld [vmem:[#allocation3 + $0x2b0] sm:$0xff]
        %v418 = vld [vmem:[#allocation3 + $0x2b8] sm:$0xff]
        %v419 = vld [vmem:[#allocation3 + $0x2c0] sm:$0xff]
        %v420 = vld [vmem:[#allocation3 + $0x2c8] sm:$0xff]
        %v421 = vld [vmem:[#allocation3 + $0x2d0] sm:$0xff]
        %v422 = vld [vmem:[#allocation3 + $0x2d8] sm:$0xff]
        %v423 = vld [vmem:[#allocation3 + $0x2e0] sm:$0xff]
        %v424 = vld [vmem:[#allocation3 + $0x2e8] sm:$0xff]
        %v425 = vld [vmem:[#allocation3 + $0x2f0] sm:$0xff]
        %v426 = vld [vmem:[#allocation3 + $0x2f8] sm:$0xff]
        %v427 = vld [vmem:[#allocation3 + $0x300] sm:$0xff]
        %v428 = vld [vmem:[#allocation3 + $0x308] sm:$0xff]
        %v429 = vld [vmem:[#allocation3 + $0x310] sm:$0xff]
        %v430 = vld [vmem:[#allocation3 + $0x318] sm:$0xff]
        %v431 = vld [vmem:[#allocation3 + $0x320] sm:$0xff]
        %v432 = vld [vmem:[#allocation3 + $0x328] sm:$0xff]
        %v433 = vld [vmem:[#allocation3 + $0x330] sm:$0xff]
        %v434 = vld [vmem:[#allocation3 + $0x338] sm:$0xff]
        %v435 = vld [vmem:[#allocation3 + $0x340] sm:$0xff]
        %v436 = vld [vmem:[#allocation3 + $0x348] sm:$0xff]
        %v437 = vld [vmem:[#allocation3 + $0x350] sm:$0xff]
        %v438 = vld [vmem:[#allocation3 + $0x358] sm:$0xff]
        %v439 = vld [vmem:[#allocation3 + $0x360] sm:$0xff]
        %v440 = vld [vmem:[#allocation3 + $0x368] sm:$0xff]
        %v441 = vld [vmem:[#allocation3 + $0x370] sm:$0xff]
        %v442 = vld [vmem:[#allocation3 + $0x378] sm:$0xff]
        %v443 = vld [vmem:[#allocation3 + $0x380] sm:$0xff]
        %v444 = vld [vmem:[#allocation3 + $0x388] sm:$0xff]
        %v445 = vld [vmem:[#allocation3 + $0x390] sm:$0xff]
        %v446 = vld [vmem:[#allocation3 + $0x398] sm:$0xff]
        %v447 = vld [vmem:[#allocation3 + $0x3a0] sm:$0xff]
        %v448 = vld [vmem:[#allocation3 + $0x3a8] sm:$0xff]
        %v449 = vld [vmem:[#allocation3 + $0x3b0] sm:$0xff]
        %v450 = vld [vmem:[#allocation3 + $0x3b8] sm:$0xff]
        %v451 = vld [vmem:[#allocation3 + $0x3c0] sm:$0xff]
        %v452 = vld [vmem:[#allocation3 + $0x3c8] sm:$0xff]
        %v453 = vld [vmem:[#allocation3 + $0x3d0] sm:$0xff]
        %v454 = vld [vmem:[#allocation3 + $0x3d8] sm:$0xff]
        %v455 = vld [vmem:[#allocation3 + $0x3e0] sm:$0xff]
        %v456 = vld [vmem:[#allocation3 + $0x3e8] sm:$0xff]
        %v457 = vld [vmem:[#allocation3 + $0x3f0] sm:$0xff]
        %v458 = vld [vmem:[#allocation3 + $0x3f8] sm:$0xff]
        %v459 = vld [vmem:[#allocation3 + $0x400] sm:$0xff]
        %v460 = vld [vmem:[#allocation3 + $0x408] sm:$0xff]
        %v461 = vld [vmem:[#allocation3 + $0x410] sm:$0xff]
        %v462 = vld [vmem:[#allocation3 + $0x418] sm:$0xff]
        %v463 = vld [vmem:[#allocation3 + $0x420] sm:$0xff]
        %v464 = vld [vmem:[#allocation3 + $0x428] sm:$0xff]
        %v465 = vld [vmem:[#allocation3 + $0x430] sm:$0xff]
        %v466 = vld [vmem:[#allocation3 + $0x438] sm:$0xff]
        %v467 = vld [vmem:[#allocation3 + $0x440] sm:$0xff]
        %v468 = vld [vmem:[#allocation3 + $0x448] sm:$0xff]
        %v469 = vld [vmem:[#allocation3 + $0x450] sm:$0xff]
        %v470 = vld [vmem:[#allocation3 + $0x458] sm:$0xff]
        %v471 = vld [vmem:[#allocation3 + $0x460] sm:$0xff]
        %v472 = vld [vmem:[#allocation3 + $0x468] sm:$0xff]
        %v473 = vld [vmem:[#allocation3 + $0x470] sm:$0xff]
        %v474 = vld [vmem:[#allocation3 + $0x478] sm:$0xff]
        %v475 = vld [vmem:[%s2] sm:$0x1]
        %v477 = vlaneseq
        %v478 = vshrl.u32 %v477, 7
        %v479 = vsub.s32 0, %v478
        %v480 = vrot.slane %v475, %v479
        %482 = vmatprep.subr.mxu0 0.0
        %483 = vmatpush1.msra.mxu0 %v346
        %484 = vmatprep.subr.mxu0 0.0
        %485 = vmatpush1.msra.mxu0 %v345
        %486 = vmatprep.subr.mxu0 0.0
        %487 = vmatpush1.msra.mxu0 %v344
        %488 = vmatprep.subr.mxu0 0.0
        %489 = vmatpush1.msra.mxu0 %v343
        %490 = vmatprep.subr.mxu0 0.0
        %491 = vmatpush1.msra.mxu0 %v342
        %492 = vmatprep.subr.mxu0 0.0
        %493 = vmatpush1.msra.mxu0 %v341
        %494 = vmatprep.subr.mxu0 0.0
        %495 = vmatpush1.msra.mxu0 %v340
        %496 = vmatprep.subr.mxu0 0.0
        %497 = vmatpush1.msra.mxu0 %v339
        %498 = vmatprep.subr.mxu0 0.0
        %499 = vmatpush1.msra.mxu0 %v338
        %500 = vmatprep.subr.mxu0 0.0
        %501 = vmatpush1.msra.mxu0 %v337
        %502 = vmatprep.subr.mxu0 0.0
        %503 = vmatpush1.msra.mxu0 %v336
        %504 = vmatprep.subr.mxu0 0.0
        %505 = vmatpush1.msra.mxu0 %v335
        %506 = vmatprep.subr.mxu0 0.0
        %507 = vmatpush1.msra.mxu0 %v334
        %508 = vmatprep.subr.mxu0 0.0
        %509 = vmatpush1.msra.mxu0 %v333
        %510 = vmatprep.subr.mxu0 0.0
        %511 = vmatpush1.msra.mxu0 %v332
        %512 = vmatprep.subr.mxu0 0.0
        %513 = vmatpush1.msra.mxu0 %v331
        %514 = vmatprep.subr.mxu0 0.0
        %515 = vmatpush2.msra.mxu0 %v362
        %516 = vmatprep.subr.mxu0 0.0
        %517 = vmatpush2.msra.mxu0 %v361
        %518 = vmatprep.subr.mxu0 0.0
        %519 = vmatpush2.msra.mxu0 %v360
        %520 = vmatprep.subr.mxu0 0.0
        %521 = vmatpush2.msra.mxu0 %v359
        %522 = vmatprep.subr.mxu0 0.0
        %523 = vmatpush2.msra.mxu0 %v358
        %524 = vmatprep.subr.mxu0 0.0
        %525 = vmatpush2.msra.mxu0 %v357
        %526 = vmatprep.subr.mxu0 0.0
        %527 = vmatpush2.msra.mxu0 %v356
        %528 = vmatprep.subr.mxu0 0.0
        %529 = vmatpush2.msra.mxu0 %v355
        %530 = vmatprep.subr.mxu0 0.0
        %531 = vmatpush2.msra.mxu0 %v354
        %532 = vmatprep.subr.mxu0 0.0
        %533 = vmatpush2.msra.mxu0 %v353
        %534 = vmatprep.subr.mxu0 0.0
        %535 = vmatpush2.msra.mxu0 %v352
        %536 = vmatprep.subr.mxu0 0.0
        %537 = vmatpush2.msra.mxu0 %v351
        %538 = vmatprep.subr.mxu0 0.0
        %539 = vmatpush2.msra.mxu0 %v350
        %540 = vmatprep.subr.mxu0 0.0
        %541 = vmatpush2.msra.mxu0 %v349
        %542 = vmatprep.subr.mxu0 0.0
        %543 = vmatpush2.msra.mxu0 %v348
        %544 = vmatprep.subr.mxu0 0.0
        %545 = vmatpush2.msra.mxu0 %v347
        %546 = vmatprep.mubr.f32.mxu0 %v261
        %547 = vmatmul.mubr.f32.gmra.mxu0 %v253
        %v548 = vpop.f32.mrf.mxu0
        %v549 = vadd.f32 %v480, %v548
        %v550 = vpop.f32.mrf.mxu0
        %551 = vmatprep.mubr.f32.mxu0 %v262
        %552 = vmatmul.mubr.f32.gmra.mxu0 %v254
        %v553 = vpop.f32.mrf.mxu0
        %v554 = vadd.f32 %v480, %v553
        %v555 = vpop.f32.mrf.mxu0
        %556 = vmatprep.mubr.f32.mxu0 %v263
        %557 = vmatmul.mubr.f32.gmra.mxu0 %v255
        %v558 = vpop.f32.mrf.mxu0
        %v559 = vadd.f32 %v480, %v558
        %v560 = vpop.f32.mrf.mxu0
        %561 = vmatprep.mubr.f32.mxu0 %v264
        %562 = vmatmul.mubr.f32.gmra.mxu0 %v256
        %v563 = vpop.f32.mrf.mxu0
        %v564 = vadd.f32 %v480, %v563
        %v565 = vpop.f32.mrf.mxu0
        %566 = vmatprep.mubr.f32.mxu0 %v265
        %567 = vmatmul.mubr.f32.gmra.mxu0 %v257
        %v568 = vpop.f32.mrf.mxu0
        %v569 = vadd.f32 %v480, %v568
        %v570 = vpop.f32.mrf.mxu0
        %571 = vmatprep.mubr.f32.mxu0 %v266
        %572 = vmatmul.mubr.f32.gmra.mxu0 %v258
        %v573 = vpop.f32.mrf.mxu0
        %v574 = vadd.f32 %v480, %v573
        %v575 = vpop.f32.mrf.mxu0
        %576 = vmatprep.mubr.f32.mxu0 %v267
        %577 = vmatmul.mubr.f32.gmra.mxu0 %v259
        %v578 = vpop.f32.mrf.mxu0
        %v579 = vadd.f32 %v480, %v578
        %v580 = vpop.f32.mrf.mxu0
        %581 = vmatprep.mubr.f32.mxu0 %v268
        %582 = vmatmul.mubr.f32.gmra.mxu0 %v260
        %v583 = vpop.f32.mrf.mxu0
        %v584 = vadd.f32 %v480, %v583
        %v585 = vpop.f32.mrf.mxu0
        %586 = vdwg.mxu0
        %587 = vmatprep.subr.mxu0 0.0
        %588 = vmatpush1.msra.mxu0 %v378
        %589 = vmatprep.subr.mxu0 0.0
        %590 = vmatpush1.msra.mxu0 %v377
        %591 = vmatprep.subr.mxu0 0.0
        %592 = vmatpush1.msra.mxu0 %v376
        %593 = vmatprep.subr.mxu0 0.0
        %594 = vmatpush1.msra.mxu0 %v375
        %595 = vmatprep.subr.mxu0 0.0
        %596 = vmatpush1.msra.mxu0 %v374
        %597 = vmatprep.subr.mxu0 0.0
        %598 = vmatpush1.msra.mxu0 %v373
        %599 = vmatprep.subr.mxu0 0.0
        %600 = vmatpush1.msra.mxu0 %v372
        %601 = vmatprep.subr.mxu0 0.0
        %602 = vmatpush1.msra.mxu0 %v371
        %603 = vmatprep.subr.mxu0 0.0
        %604 = vmatpush1.msra.mxu0 %v370
        %605 = vmatprep.subr.mxu0 0.0
        %606 = vmatpush1.msra.mxu0 %v369
        %607 = vmatprep.subr.mxu0 0.0
        %608 = vmatpush1.msra.mxu0 %v368
        %609 = vmatprep.subr.mxu0 0.0
        %610 = vmatpush1.msra.mxu0 %v367
        %611 = vmatprep.subr.mxu0 0.0
        %612 = vmatpush1.msra.mxu0 %v366
        %613 = vmatprep.subr.mxu0 0.0
        %614 = vmatpush1.msra.mxu0 %v365
        %615 = vmatprep.subr.mxu0 0.0
        %616 = vmatpush1.msra.mxu0 %v364
        %617 = vmatprep.subr.mxu0 0.0
        %618 = vmatpush1.msra.mxu0 %v363
        %619 = vmatprep.subr.mxu0 0.0
        %620 = vmatpush2.msra.mxu0 %v394
        %621 = vmatprep.subr.mxu0 0.0
        %622 = vmatpush2.msra.mxu0 %v393
        %623 = vmatprep.subr.mxu0 0.0
        %624 = vmatpush2.msra.mxu0 %v392
        %625 = vmatprep.subr.mxu0 0.0
        %626 = vmatpush2.msra.mxu0 %v391
        %627 = vmatprep.subr.mxu0 0.0
        %628 = vmatpush2.msra.mxu0 %v390
        %629 = vmatprep.subr.mxu0 0.0
        %630 = vmatpush2.msra.mxu0 %v389
        %631 = vmatprep.subr.mxu0 0.0
        %632 = vmatpush2.msra.mxu0 %v388
        %633 = vmatprep.subr.mxu0 0.0
        %634 = vmatpush2.msra.mxu0 %v387
        %635 = vmatprep.subr.mxu0 0.0
        %636 = vmatpush2.msra.mxu0 %v386
        %637 = vmatprep.subr.mxu0 0.0
        %638 = vmatpush2.msra.mxu0 %v385
        %639 = vmatprep.subr.mxu0 0.0
        %640 = vmatpush2.msra.mxu0 %v384
        %641 = vmatprep.subr.mxu0 0.0
        %642 = vmatpush2.msra.mxu0 %v383
        %643 = vmatprep.subr.mxu0 0.0
        %644 = vmatpush2.msra.mxu0 %v382
        %645 = vmatprep.subr.mxu0 0.0
        %646 = vmatpush2.msra.mxu0 %v381
        %647 = vmatprep.subr.mxu0 0.0
        %648 = vmatpush2.msra.mxu0 %v380
        %649 = vmatprep.subr.mxu0 0.0
        %650 = vmatpush2.msra.mxu0 %v379
        %651 = vmatprep.mubr.f32.mxu0 %v280
        %652 = vmatmul.mubr.f32.gmra.mxu0 %v269
        %v653 = vpop.f32.mrf.mxu0
        %v654 = vadd.f32 %v549, %v653
        %v655 = vpop.f32.mrf.mxu0
        %656 = vmatprep.mubr.f32.mxu0 %v281
        %657 = vmatmul.mubr.f32.gmra.mxu0 %v270
        %v658 = vpop.f32.mrf.mxu0
        %v659 = vadd.f32 %v554, %v658
        %v660 = vpop.f32.mrf.mxu0
        %661 = vmatprep.mubr.f32.mxu0 %v282
        %662 = vmatmul.mubr.f32.gmra.mxu0 %v271
        %v663 = vpop.f32.mrf.mxu0
        %v664 = vadd.f32 %v559, %v663
        %v665 = vpop.f32.mrf.mxu0
        %666 = vmatprep.mubr.f32.mxu0 %v283
        %667 = vmatmul.mubr.f32.gmra.mxu0 %v272
        %v668 = vpop.f32.mrf.mxu0
        %v669 = vadd.f32 %v564, %v668
        %v670 = vpop.f32.mrf.mxu0
        %671 = vmatprep.mubr.f32.mxu0 %v284
        %672 = vmatmul.mubr.f32.gmra.mxu0 %v273
        %v673 = vpop.f32.mrf.mxu0
        %v674 = vadd.f32 %v569, %v673
        %v675 = vpop.f32.mrf.mxu0
        %676 = vmatprep.mubr.f32.mxu0 %v285
        %677 = vmatmul.mubr.f32.gmra.mxu0 %v274
        %v678 = vpop.f32.mrf.mxu0
        %v679 = vadd.f32 %v574, %v678
        %v680 = vpop.f32.mrf.mxu0
        %681 = vmatprep.mubr.f32.mxu0 %v286
        %682 = vmatmul.mubr.f32.gmra.mxu0 %v275
        %v683 = vpop.f32.mrf.mxu0
        %v684 = vadd.f32 %v579, %v683
        %v685 = vpop.f32.mrf.mxu0
        %686 = vmatprep.mubr.f32.mxu0 %v287
        %687 = vmatmul.mubr.f32.gmra.mxu0 %v276
        %v688 = vpop.f32.mrf.mxu0
        %v689 = vadd.f32 %v584, %v688
        %v690 = vpop.f32.mrf.mxu0
        %691 = vdwg.mxu0
        %692 = vmatprep.subr.mxu0 0.0
        %693 = vmatpush1.msra.mxu0 %v410
        %694 = vmatprep.subr.mxu0 0.0
        %695 = vmatpush1.msra.mxu0 %v409
        %696 = vmatprep.subr.mxu0 0.0
        %697 = vmatpush1.msra.mxu0 %v408
        %698 = vmatprep.subr.mxu0 0.0
        %699 = vmatpush1.msra.mxu0 %v407
        %700 = vmatprep.subr.mxu0 0.0
        %701 = vmatpush1.msra.mxu0 %v406
        %702 = vmatprep.subr.mxu0 0.0
        %703 = vmatpush1.msra.mxu0 %v405
        %704 = vmatprep.subr.mxu0 0.0
        %705 = vmatpush1.msra.mxu0 %v404
        %706 = vmatprep.subr.mxu0 0.0
        %707 = vmatpush1.msra.mxu0 %v403
        %708 = vmatprep.subr.mxu0 0.0
        %709 = vmatpush1.msra.mxu0 %v402
        %710 = vmatprep.subr.mxu0 0.0
        %711 = vmatpush1.msra.mxu0 %v401
        %712 = vmatprep.subr.mxu0 0.0
        %713 = vmatpush1.msra.mxu0 %v400
        %714 = vmatprep.subr.mxu0 0.0
        %715 = vmatpush1.msra.mxu0 %v399
        %716 = vmatprep.subr.mxu0 0.0
        %717 = vmatpush1.msra.mxu0 %v398
        %718 = vmatprep.subr.mxu0 0.0
        %719 = vmatpush1.msra.mxu0 %v397
        %720 = vmatprep.subr.mxu0 0.0
        %721 = vmatpush1.msra.mxu0 %v396
        %722 = vmatprep.subr.mxu0 0.0
        %723 = vmatpush1.msra.mxu0 %v395
        %724 = vmatprep.subr.mxu0 0.0
        %725 = vmatpush2.msra.mxu0 %v426
        %726 = vmatprep.subr.mxu0 0.0
        %727 = vmatpush2.msra.mxu0 %v425
        %728 = vmatprep.subr.mxu0 0.0
        %729 = vmatpush2.msra.mxu0 %v424
        %730 = vmatprep.subr.mxu0 0.0
        %731 = vmatpush2.msra.mxu0 %v423
        %732 = vmatprep.subr.mxu0 0.0
        %733 = vmatpush2.msra.mxu0 %v422
        %734 = vmatprep.subr.mxu0 0.0
        %735 = vmatpush2.msra.mxu0 %v421
        %736 = vmatprep.subr.mxu0 0.0
        %737 = vmatpush2.msra.mxu0 %v420
        %738 = vmatprep.subr.mxu0 0.0
        %739 = vmatpush2.msra.mxu0 %v419
        %740 = vmatprep.subr.mxu0 0.0
        %741 = vmatpush2.msra.mxu0 %v418
        %742 = vmatprep.subr.mxu0 0.0
        %743 = vmatpush2.msra.mxu0 %v417
        %744 = vmatprep.subr.mxu0 0.0
        %745 = vmatpush2.msra.mxu0 %v416
        %746 = vmatprep.subr.mxu0 0.0
        %747 = vmatpush2.msra.mxu0 %v415
        %748 = vmatprep.subr.mxu0 0.0
        %749 = vmatpush2.msra.mxu0 %v414
        %750 = vmatprep.subr.mxu0 0.0
        %751 = vmatpush2.msra.mxu0 %v413
        %752 = vmatprep.subr.mxu0 0.0
        %753 = vmatpush2.msra.mxu0 %v412
        %754 = vmatprep.subr.mxu0 0.0
        %755 = vmatpush2.msra.mxu0 %v411
        %756 = vmatprep.mubr.f32.mxu0 %v296
        %757 = vmatmul.mubr.f32.gmra.mxu0 %v288
        %v758 = vpop.f32.mrf.mxu0
        %v759 = vadd.f32 %v654, %v758
        %v760 = vpop.f32.mrf.mxu0
        %761 = vmatprep.mubr.f32.mxu0 %v297
        %762 = vmatmul.mubr.f32.gmra.mxu0 %v289
        %v763 = vpop.f32.mrf.mxu0
        %v764 = vadd.f32 %v659, %v763
        %v765 = vpop.f32.mrf.mxu0
        %766 = vmatprep.mubr.f32.mxu0 %v298
        %767 = vmatmul.mubr.f32.gmra.mxu0 %v290
        %v768 = vpop.f32.mrf.mxu0
        %v769 = vadd.f32 %v664, %v768
        %v770 = vpop.f32.mrf.mxu0
        %771 = vmatprep.mubr.f32.mxu0 %v299
        %772 = vmatmul.mubr.f32.gmra.mxu0 %v291
        %v773 = vpop.f32.mrf.mxu0
        %v774 = vadd.f32 %v669, %v773
        %v775 = vpop.f32.mrf.mxu0
        %776 = vmatprep.mubr.f32.mxu0 %v300
        %777 = vmatmul.mubr.f32.gmra.mxu0 %v292
        %v778 = vpop.f32.mrf.mxu0
        %v779 = vadd.f32 %v674, %v778
        %v780 = vpop.f32.mrf.mxu0
        %781 = vmatprep.mubr.f32.mxu0 %v301
        %782 = vmatmul.mubr.f32.gmra.mxu0 %v293
        %v783 = vpop.f32.mrf.mxu0
        %v784 = vadd.f32 %v679, %v783
        %v785 = vpop.f32.mrf.mxu0
        %786 = vmatprep.mubr.f32.mxu0 %v302
        %787 = vmatmul.mubr.f32.gmra.mxu0 %v294
        %v788 = vpop.f32.mrf.mxu0
        %v789 = vadd.f32 %v684, %v788
        %v790 = vpop.f32.mrf.mxu0
        %791 = vmatprep.mubr.f32.mxu0 %v303
        %792 = vmatmul.mubr.f32.gmra.mxu0 %v295
        %v793 = vpop.f32.mrf.mxu0
        %v794 = vadd.f32 %v689, %v793
        %v795 = vpop.f32.mrf.mxu0
        %796 = vdwg.mxu0
        %797 = vmatprep.subr.mxu0 0.0
        %798 = vmatpush1.msra.mxu0 %v442
        %799 = vmatprep.subr.mxu0 0.0
        %800 = vmatpush1.msra.mxu0 %v441
        %801 = vmatprep.subr.mxu0 0.0
        %802 = vmatpush1.msra.mxu0 %v440
        %803 = vmatprep.subr.mxu0 0.0
        %804 = vmatpush1.msra.mxu0 %v439
        %805 = vmatprep.subr.mxu0 0.0
        %806 = vmatpush1.msra.mxu0 %v438
        %807 = vmatprep.subr.mxu0 0.0
        %808 = vmatpush1.msra.mxu0 %v437
        %809 = vmatprep.subr.mxu0 0.0
        %810 = vmatpush1.msra.mxu0 %v436
        %811 = vmatprep.subr.mxu0 0.0
        %812 = vmatpush1.msra.mxu0 %v435
        %813 = vmatprep.subr.mxu0 0.0
        %814 = vmatpush1.msra.mxu0 %v434
        %815 = vmatprep.subr.mxu0 0.0
        %816 = vmatpush1.msra.mxu0 %v433
        %817 = vmatprep.subr.mxu0 0.0
        %818 = vmatpush1.msra.mxu0 %v432
        %819 = vmatprep.subr.mxu0 0.0
        %820 = vmatpush1.msra.mxu0 %v431
        %821 = vmatprep.subr.mxu0 0.0
        %822 = vmatpush1.msra.mxu0 %v430
        %823 = vmatprep.subr.mxu0 0.0
        %824 = vmatpush1.msra.mxu0 %v429
        %825 = vmatprep.subr.mxu0 0.0
        %826 = vmatpush1.msra.mxu0 %v428
        %827 = vmatprep.subr.mxu0 0.0
        %828 = vmatpush1.msra.mxu0 %v427
        %829 = vmatprep.subr.mxu0 0.0
        %830 = vmatpush2.msra.mxu0 %v458
        %831 = vmatprep.subr.mxu0 0.0
        %832 = vmatpush2.msra.mxu0 %v457
        %833 = vmatprep.subr.mxu0 0.0
        %834 = vmatpush2.msra.mxu0 %v456
        %835 = vmatprep.subr.mxu0 0.0
        %836 = vmatpush2.msra.mxu0 %v455
        %837 = vmatprep.subr.mxu0 0.0
        %838 = vmatpush2.msra.mxu0 %v454
        %839 = vmatprep.subr.mxu0 0.0
        %840 = vmatpush2.msra.mxu0 %v453
        %841 = vmatprep.subr.mxu0 0.0
        %842 = vmatpush2.msra.mxu0 %v452
        %843 = vmatprep.subr.mxu0 0.0
        %844 = vmatpush2.msra.mxu0 %v451
        %845 = vmatprep.subr.mxu0 0.0
        %846 = vmatpush2.msra.mxu0 %v450
        %847 = vmatprep.subr.mxu0 0.0
        %848 = vmatpush2.msra.mxu0 %v449
        %849 = vmatprep.subr.mxu0 0.0
        %850 = vmatpush2.msra.mxu0 %v448
        %851 = vmatprep.subr.mxu0 0.0
        %852 = vmatpush2.msra.mxu0 %v447
        %853 = vmatprep.subr.mxu0 0.0
        %854 = vmatpush2.msra.mxu0 %v446
        %855 = vmatprep.subr.mxu0 0.0
        %856 = vmatpush2.msra.mxu0 %v445
        %857 = vmatprep.subr.mxu0 0.0
        %858 = vmatpush2.msra.mxu0 %v444
        %859 = vmatprep.subr.mxu0 0.0
        %860 = vmatpush2.msra.mxu0 %v443
        %861 = vmatprep.mubr.f32.mxu0 %v315
        %862 = vmatmul.mubr.f32.gmra.mxu0 %v307
        %v863 = vpop.f32.mrf.mxu0
        %v864 = vadd.f32 %v759, %v863
        %v865 = vpop.f32.mrf.mxu0
        %866 = vmatprep.mubr.f32.mxu0 %v316
        %867 = vmatmul.mubr.f32.gmra.mxu0 %v308
        %v868 = vpop.f32.mrf.mxu0
        %v869 = vadd.f32 %v764, %v868
        %v870 = vpop.f32.mrf.mxu0
        %871 = vmatprep.mubr.f32.mxu0 %v317
        %872 = vmatmul.mubr.f32.gmra.mxu0 %v309
        %v873 = vpop.f32.mrf.mxu0
        %v874 = vadd.f32 %v769, %v873
        %v875 = vpop.f32.mrf.mxu0
        %876 = vmatprep.mubr.f32.mxu0 %v318
        %877 = vmatmul.mubr.f32.gmra.mxu0 %v310
        %v878 = vpop.f32.mrf.mxu0
        %v879 = vadd.f32 %v774, %v878
        %v880 = vpop.f32.mrf.mxu0
        %881 = vmatprep.mubr.f32.mxu0 %v319
        %882 = vmatmul.mubr.f32.gmra.mxu0 %v311
        %v883 = vpop.f32.mrf.mxu0
        %v884 = vadd.f32 %v779, %v883
        %v885 = vpop.f32.mrf.mxu0
        %886 = vmatprep.mubr.f32.mxu0 %v320
        %887 = vmatmul.mubr.f32.gmra.mxu0 %v312
        %v888 = vpop.f32.mrf.mxu0
        %v889 = vadd.f32 %v784, %v888
        %v890 = vpop.f32.mrf.mxu0
        %891 = vmatprep.mubr.f32.mxu0 %v321
        %892 = vmatmul.mubr.f32.gmra.mxu0 %v313
        %v893 = vpop.f32.mrf.mxu0
        %v894 = vadd.f32 %v789, %v893
        %v895 = vpop.f32.mrf.mxu0
        %896 = vmatprep.mubr.f32.mxu0 %v322
        %897 = vmatmul.mubr.f32.gmra.mxu0 %v314
        %v898 = vpop.f32.mrf.mxu0
        %v899 = vadd.f32 %v794, %v898
        %v900 = vpop.f32.mrf.mxu0
        %901 = vdwg.mxu0
        %902 = vmatprep.subr.mxu0 0.0
        %903 = vmatpush1.msra.mxu0 %v474
        %904 = vmatprep.subr.mxu0 0.0
        %905 = vmatpush1.msra.mxu0 %v473
        %906 = vmatprep.subr.mxu0 0.0
        %907 = vmatpush1.msra.mxu0 %v472
        %908 = vmatprep.subr.mxu0 0.0
        %909 = vmatpush1.msra.mxu0 %v471
        %910 = vmatprep.subr.mxu0 0.0
        %911 = vmatpush1.msra.mxu0 %v470
        %912 = vmatprep.subr.mxu0 0.0
        %913 = vmatpush1.msra.mxu0 %v469
        %914 = vmatprep.subr.mxu0 0.0
        %915 = vmatpush1.msra.mxu0 %v468
        %916 = vmatprep.subr.mxu0 0.0
        %917 = vmatpush1.msra.mxu0 %v467
        %918 = vmatprep.subr.mxu0 0.0
        %919 = vmatpush1.msra.mxu0 %v466
        %920 = vmatprep.subr.mxu0 0.0
        %921 = vmatpush1.msra.mxu0 %v465
        %922 = vmatprep.subr.mxu0 0.0
        %923 = vmatpush1.msra.mxu0 %v464
        %924 = vmatprep.subr.mxu0 0.0
        %925 = vmatpush1.msra.mxu0 %v463
        %926 = vmatprep.subr.mxu0 0.0
        %927 = vmatpush1.msra.mxu0 %v462
        %928 = vmatprep.subr.mxu0 0.0
        %929 = vmatpush1.msra.mxu0 %v461
        %930 = vmatprep.subr.mxu0 0.0
        %931 = vmatpush1.msra.mxu0 %v460
        %932 = vmatprep.subr.mxu0 0.0
        %933 = vmatpush1.msra.mxu0 %v459
        %934 = vmatprep.subr.mxu0 0.0
        %935 = vmatpush2.msra.mxu0 0.0
        %936 = vmatprep.subr.mxu0 0.0
        %937 = vmatpush2.msra.mxu0 0.0
        %938 = vmatprep.subr.mxu0 0.0
        %939 = vmatpush2.msra.mxu0 0.0
        %940 = vmatprep.subr.mxu0 0.0
        %941 = vmatpush2.msra.mxu0 0.0
        %942 = vmatprep.subr.mxu0 0.0
        %943 = vmatpush2.msra.mxu0 0.0
        %944 = vmatprep.subr.mxu0 0.0
        %945 = vmatpush2.msra.mxu0 0.0
        %946 = vmatprep.subr.mxu0 0.0
        %947 = vmatpush2.msra.mxu0 0.0
        %948 = vmatprep.subr.mxu0 0.0
        %949 = vmatpush2.msra.mxu0 0.0
        %950 = vmatprep.subr.mxu0 0.0
        %951 = vmatpush2.msra.mxu0 0.0
        %952 = vmatprep.subr.mxu0 0.0
        %953 = vmatpush2.msra.mxu0 0.0
        %954 = vmatprep.subr.mxu0 0.0
        %955 = vmatpush2.msra.mxu0 0.0
        %956 = vmatprep.subr.mxu0 0.0
        %957 = vmatpush2.msra.mxu0 0.0
        %958 = vmatprep.subr.mxu0 0.0
        %959 = vmatpush2.msra.mxu0 0.0
        %960 = vmatprep.subr.mxu0 0.0
        %961 = vmatpush2.msra.mxu0 0.0
        %962 = vmatprep.subr.mxu0 0.0
        %963 = vmatpush2.msra.mxu0 0.0
        %964 = vmatprep.subr.mxu0 0.0
        %965 = vmatpush2.msra.mxu0 0.0
        %966 = vmatprep.mubr.f32.mxu0 0.0
        %967 = vmatmul.mubr.f32.gmra.mxu0 %v323
        %v968 = vpop.f32.mrf.mxu0
        %v969 = vadd.f32 %v864, %v968
        %v970 = vpop.f32.mrf.mxu0
        %971 = vmatprep.mubr.f32.mxu0 0.0
        %972 = vmatmul.mubr.f32.gmra.mxu0 %v324
        %v973 = vpop.f32.mrf.mxu0
        %v974 = vadd.f32 %v869, %v973
        %v975 = vpop.f32.mrf.mxu0
        %976 = vmatprep.mubr.f32.mxu0 0.0
        %977 = vmatmul.mubr.f32.gmra.mxu0 %v325
        %v978 = vpop.f32.mrf.mxu0
        %v979 = vadd.f32 %v874, %v978
        %v980 = vpop.f32.mrf.mxu0
        %981 = vmatprep.mubr.f32.mxu0 0.0
        %982 = vmatmul.mubr.f32.gmra.mxu0 %v326
        %v983 = vpop.f32.mrf.mxu0
        %v984 = vadd.f32 %v879, %v983
        %v985 = vpop.f32.mrf.mxu0
        %986 = vmatprep.mubr.f32.mxu0 0.0
        %987 = vmatmul.mubr.f32.gmra.mxu0 %v327
        %v988 = vpop.f32.mrf.mxu0
        %v989 = vadd.f32 %v884, %v988
        %v990 = vpop.f32.mrf.mxu0
        %991 = vmatprep.mubr.f32.mxu0 0.0
        %992 = vmatmul.mubr.f32.gmra.mxu0 %v328
        %v993 = vpop.f32.mrf.mxu0
        %v994 = vadd.f32 %v889, %v993
        %v995 = vpop.f32.mrf.mxu0
        %996 = vmatprep.mubr.f32.mxu0 0.0
        %997 = vmatmul.mubr.f32.gmra.mxu0 %v329
        %v998 = vpop.f32.mrf.mxu0
        %v999 = vadd.f32 %v894, %v998
        %v1000 = vpop.f32.mrf.mxu0
        %1001 = vmatprep.mubr.f32.mxu0 0.0
        %1002 = vmatmul.mubr.f32.gmra.mxu0 %v330
        %v1003 = vpop.f32.mrf.mxu0
        %v1004 = vadd.f32 %v899, %v1003
        %v1005 = vpop.f32.mrf.mxu0
        %1006 = vdwg.mxu0
        %v1007 = vmax.f32 %v969, 0.0
        %v1008 = vmax.f32 %v974, 0.0
        %v1009 = vmax.f32 %v979, 0.0
        %v1010 = vmax.f32 %v984, 0.0
        %v1011 = vmax.f32 %v989, 0.0
        %v1012 = vmax.f32 %v994, 0.0
        %v1013 = vmax.f32 %v999, 0.0
        %v1014 = vmax.f32 %v1004, 0.0
        %1015 = vst [vmem:[%s207] sm:$0xff] %v1007
        %1016 = vst [vmem:[%s207 + $0x8] sm:$0xff] %v1008
        %1017 = vst [vmem:[%s207 + $0x10] sm:$0xff] %v1009
        %1018 = vst [vmem:[%s207 + $0x18] sm:$0xff] %v1010
        %1019 = vst [vmem:[%s207 + $0x20] sm:$0xff] %v1011
        %1020 = vst [vmem:[%s207 + $0x28] sm:$0xff] %v1012
        %1021 = vst [vmem:[%s207 + $0x30] sm:$0xff] %v1013
        %1022 = vst [vmem:[%s207 + $0x38] sm:$0xff] %v1014
        %s1023 = smul.u32 8, %s20
        %p1024 = scmp.lt.s32.totalorder %s19, 1
        %s1025 = scalar_select %p1024, %s19, 1
        %p1026 = scmp.lt.s32.totalorder %s1023, 7
        %s1027 = scalar_select %p1026, %s1023, 7
        %s1028 = smul.addr %s1025, 8
        %s1029 = sadd.s32 %s1027, %s1028
        %s1030 = smul.addr %s1029, 8
        %s1031 = scalar_lea.vmem %s3, %s1030
        // Predicated region
        $region41: #{down_forward.3} parent=31 // pred_check
          %p1032 = pneg %p115
        $region42: #{down_forward.3} parent=31 // pred_check_branch
          %1034 = sbr.rel (%p1032) target = $region44
        $region43: #{down_forward.3} parent=31 // pred_region
          %s1035 = smul.u32 8, %s20
        $region44: #{down_forward.3} parent=31 // pred_fallthru
          _
      $region32: #{down_forward.3} parent=5 // pred_fallthru
        _
      %p1036 = scmp.le.s32.totalorder 2, %s10
      // Predicated region
      $region45: #{down_forward.3} parent=5 // pred_check
        %p1037 = pneg %p1036
      $region46: #{down_forward.3} parent=5 // pred_check_branch
        %1039 = sbr.rel (%p1037) target = $region48
      $region47: #{down_forward.3} parent=5 // pred_region
        %s1040 = ssub.s32 %s10, 2
        // Predicated region
        $region49: #{down_forward.3} parent=47 // pred_check
          %p1041 = pneg %p121
        $region50: #{down_forward.3} parent=47 // pred_check_branch
          %1043 = sbr.rel (%p1041) target = $region52
        $region51: #{down_forward.3} parent=47 // pred_region
          %s1044 = smul.u32 8, %s22
          %p1045 = scmp.lt.s32.totalorder %s21, 1
          %s1046 = scalar_select %p1045, %s21, 1
          %p1047 = scmp.lt.s32.totalorder %s1044, 7
          %s1048 = scalar_select %p1047, %s1044, 7
          %s1049 = smul.addr %s1046, 8
          %s1050 = sadd.s32 %s1048, %s1049
          %s1051 = smul.addr %s1050, 8
          %s1052 = scalar_lea.vmem %s3, %s1051
        $region52: #{down_forward.3} parent=47 // pred_fallthru
          _
      $region48: #{down_forward.3} parent=5 // pred_fallthru
        _
    $region6: #{down_forward.3} parent=1 // loop_footer
      %s14 = sadd.s32 1, %s10
    $region7: #{down_forward.3} parent=1 // loop_footer_branch
      %9 = sbr.rel target = $region3
    $region8: #{down_forward.3} parent=1 // loop_exit
      _
    %1053 = vsyncpa [#allocation4], 1
    %s1054 = scalar_lea.sflag [#allocation4], 1
    %1055 = vsyncpa %s1054, 1

</llo_original>
